<compile_context>
chip_gen: v7x
topology: tpu7x:2x2x1
jax: 0.10.0
libtpu: 0.0.40
codegen_flags: <defaults>
</compile_context>

<pallas_src>
import jax
import jax.numpy as jnp
from jax.experimental import pallas as pl
from jax.experimental.pallas import tpu as pltpu


def _round_up(x: int, m: int) -> int:
    return ((x + m - 1) // m) * m


def _softplus(x):
    # Numerically stable softplus: log1p(exp(-|x|)) + max(x, 0).
    # Matches torch.nn.Softplus(beta=1, threshold=20) to within f32 roundoff
    # (for x > 20 the correction term is below one ulp of x).
    return jnp.log1p(jnp.exp(-jnp.abs(x))) + jnp.maximum(x, 0.0)


def _make_decoder_kernel(num_hidden: int, log_output: bool, compute_dtype):
    """Fused kernel: num_hidden (Linear+softplus) layers + output Linear + (log-)softmax."""

    def kernel(*refs):
        # refs = (z, w1, b1, ..., wH, bH, w_out, b_out, out)
        z_ref = refs[0]
        out_ref = refs[-1]
        h = z_ref[...]
        idx = 1
        for _ in range(num_hidden):
            w_ref, b_ref = refs[idx], refs[idx + 1]
            idx += 2
            acc = jnp.dot(
                h.astype(compute_dtype), w_ref[...],
                preferred_element_type=jnp.float32,
            )
            h = _softplus(acc + b_ref[...])
        wo_ref, bo_ref = refs[idx], refs[idx + 1]
        logits = jnp.dot(
            h.astype(compute_dtype), wo_ref[...],
            preferred_element_type=jnp.float32,
        ) + bo_ref[...]

        # Numerically-stable (log-)softmax along the gene axis (whole axis in-block).
        m = jnp.max(logits, axis=-1, keepdims=True)
        shifted = logits - m
        e = jnp.exp(shifted)
        s = jnp.sum(e, axis=-1, keepdims=True)
        if log_output:
            out_ref[...] = shifted - jnp.log(s)
        else:
            out_ref[...] = e * pl.reciprocal(s, approx=False)

    return kernel


def decoder_forward(z, params, *, log_output: bool = False, tile_b: int = 128,
                    compute_dtype=jnp.bfloat16):
    """params = [(w1, b1), ..., (wH, bH), (w_out, b_out)] with w: (in, out), b: (1, out)."""
    num_hidden = len(params) - 1
    batch, latent = z.shape
    out_dim = int(params[-1][0].shape[1])

    # Batch tile: multiple of 8, at most tile_b, no bigger than needed for tiny batches.
    tb = min(tile_b, _round_up(batch, 8))
    padded = _round_up(batch, tb)
    if padded != batch:
        z = jnp.pad(z, ((0, padded - batch), (0, 0)))

    # Flatten args; weights are cast to the matmul compute dtype (halves weight DMA
    # bytes for bf16), biases stay f32 since the add/activation math is f32.
    flat_args = [z]
    in_specs = [pl.BlockSpec((tb, latent), lambda i: (i, 0))]
    for w, b in params:
        flat_args.append(w.astype(compute_dtype))
        flat_args.append(b.astype(jnp.float32))
        in_specs.append(pl.BlockSpec(w.shape, lambda i: (0, 0)))  # resident weight
        in_specs.append(pl.BlockSpec(b.shape, lambda i: (0, 0)))  # resident bias
    out_spec = pl.BlockSpec((tb, out_dim), lambda i: (i, 0))

    # Advisory cost estimate for the XLA scheduler.
    dims = [latent] + [int(w.shape[1]) for w, _ in params]
    flops = 2 * padded * sum(dims[i] * dims[i + 1] for i in range(len(dims) - 1))
    transcendentals = padded * (2 * sum(dims[1:-1]) + dims[-1])
    bytes_accessed = (
        padded * latent * 4
        + sum(int(a.size) * a.dtype.itemsize for a in flat_args[1:])
        + padded * out_dim * 4
    )

    # VMEM budget: resident weights + double-buffered z/out tiles + activation headroom.
    resident_bytes = sum(int(a.size) * a.dtype.itemsize for a in flat_args[1:])
    vmem_needed = (
        resident_bytes
        + 2 * tb * latent * 4
        + 2 * tb * out_dim * 4
        + 4 * tb * max(dims) * 4
    )
    vmem_limit = int(min(max(2 * vmem_needed, 32 << 20), 64 << 20))

    kernel = _make_decoder_kernel(num_hidden, log_output, compute_dtype)

    out_padded = pl.pallas_call(
        kernel,
        out_shape=jax.ShapeDtypeStruct((padded, out_dim), jnp.float32),
        grid=(padded // tb,),
        in_specs=in_specs,
        out_specs=out_spec,
        compiler_params=pltpu.CompilerParams(
            dimension_semantics=("parallel",),
            vmem_limit_bytes=vmem_limit,
        ),
        cost_estimate=pl.CostEstimate(
            flops=int(flops),
            transcendentals=int(transcendentals),
            bytes_accessed=int(bytes_accessed),
        ),
    )(*flat_args)

    return out_padded[:batch]


def init_decoder_params(key, input_dim, hidden_dims, output_dim):
    """Deterministic init mimicking PyTorch nn.Linear default (uniform +/- 1/sqrt(fan_in))."""
    dims = [input_dim] + list(hidden_dims) + [output_dim]
    params = []
    for i in range(len(dims) - 1):
        fan_in, fan_out = dims[i], dims[i + 1]
        key, kw, kb = jax.random.split(key, 3)
        bound = 1.0 / jnp.sqrt(jnp.float32(fan_in))
        w = jax.random.uniform(kw, (fan_in, fan_out), jnp.float32, -bound, bound)
        b = jax.random.uniform(kb, (1, fan_out), jnp.float32, -bound, bound)
        params.append((w, b))
    return params


def decoder_reference(z, params, *, log_output: bool = False):
    """Plain-JAX f32 reference for correctness checking."""
    h = z
    for w, b in params[:-1]:
        h = jax.nn.softplus(h @ w + b)
    logits = h @ params[-1][0] + params[-1][1]
    if log_output:
        return jax.nn.log_softmax(logits, axis=-1)
    return jax.nn.softmax(logits, axis=-1)


if __name__ == "__main__":
    # Shapes consistent with the module (latent 16, hidden [64, 128], 256 "genes").
    # batch=200 exercises the batch grid (2 steps of 128) and the pad/slice path.
    input_dim, hidden_dims, output_dim = 16, [64, 128], 256
    batch = 200

    key = jax.random.PRNGKey(0)
    key, kz = jax.random.split(key)
    z = jax.random.normal(kz, (batch, input_dim), jnp.float32)
    params = init_decoder_params(key, input_dim, hidden_dims, output_dim)

    # ---- exact-semantics check (f32 matmuls) ----
    ref = decoder_reference(z, params, log_output=False)
    ref_log = decoder_reference(z, params, log_output=True)

    out_f32 = jax.block_until_ready(
        decoder_forward(z, params, log_output=False, compute_dtype=jnp.float32))
    assert out_f32.shape == (batch, output_dim)
    assert jnp.allclose(out_f32, ref, atol=2e-4, rtol=2e-4)
    assert jnp.allclose(jnp.sum(out_f32, axis=-1), jnp.ones((batch,)), atol=1e-4)

    out_f32_log = jax.block_until_ready(
        decoder_forward(z, params, log_output=True, compute_dtype=jnp.float32))
    assert jnp.allclose(out_f32_log, ref_log, atol=2e-4, rtol=2e-4)

    # ---- fast path check (bf16 matmul operands, f32 accumulation) ----
    out_bf16 = jax.block_until_ready(
        decoder_forward(z, params, log_output=False, compute_dtype=jnp.bfloat16))
    assert jnp.allclose(out_bf16, ref, atol=1e-3, rtol=2e-2)
    assert jnp.allclose(jnp.sum(out_bf16, axis=-1), jnp.ones((batch,)), atol=1e-3)

    out_bf16_log = jax.block_until_ready(
        decoder_forward(z, params, log_output=True, compute_dtype=jnp.bfloat16))
    assert jnp.allclose(out_bf16_log, ref_log, atol=5e-2, rtol=1e-2)
    assert jnp.allclose(jnp.sum(jnp.exp(out_bf16_log), axis=-1),
                        jnp.ones((batch,)), atol=1e-3)

    print("KERNEL_OK")
</pallas_src>

<mosaic_0001>
module attributes {stable_mosaic.version = 11 : i64} {
  func.func @kernel(%arg0: i32, %arg1: memref<128x16xf32, #tpu.memory_space<vmem>>, %arg2: memref<16x64xf32, #tpu.memory_space<vmem>>, %arg3: memref<1x64xf32, #tpu.memory_space<vmem>>, %arg4: memref<64x128xf32, #tpu.memory_space<vmem>>, %arg5: memref<1x128xf32, #tpu.memory_space<vmem>>, %arg6: memref<128x256xf32, #tpu.memory_space<vmem>>, %arg7: memref<1x256xf32, #tpu.memory_space<vmem>>, %arg8: memref<128x256xf32, #tpu.memory_space<vmem>>) attributes {dimension_semantics = [#tpu.dimension_semantics<parallel>], iteration_bounds = array<i64: 2>, scalar_prefetch = 0 : i64, scratch_operands = 0 : i64, tpu.core_type = #tpu.core_type<tc>, window_params = [{transform_indices = @transform_0, window_bounds = array<i64: 128, 16>}, {pipeline_mode = #tpu.pipeline_mode<synchronous>, transform_indices = @transform_1, window_bounds = array<i64: 16, 64>}, {pipeline_mode = #tpu.pipeline_mode<synchronous>, transform_indices = @transform_2, window_bounds = array<i64: 1, 64>}, {pipeline_mode = #tpu.pipeline_mode<synchronous>, transform_indices = @transform_3, window_bounds = array<i64: 64, 128>}, {pipeline_mode = #tpu.pipeline_mode<synchronous>, transform_indices = @transform_4, window_bounds = array<i64: 1, 128>}, {pipeline_mode = #tpu.pipeline_mode<synchronous>, transform_indices = @transform_5, window_bounds = array<i64: 128, 256>}, {pipeline_mode = #tpu.pipeline_mode<synchronous>, transform_indices = @transform_6, window_bounds = array<i64: 1, 256>}, {transform_indices = @transform_7, window_bounds = array<i64: 128, 256>}]} {
    %c0 = arith.constant 0 : index
    %c0_0 = arith.constant 0 : index
    %0 = vector.load %arg1[%c0, %c0_0] : memref<128x16xf32, #tpu.memory_space<vmem>>, vector<128x16xf32>
    %c0_1 = arith.constant 0 : index
    %c0_2 = arith.constant 0 : index
    %1 = vector.load %arg2[%c0_1, %c0_2] : memref<16x64xf32, #tpu.memory_space<vmem>>, vector<16x64xf32>
    %cst = arith.constant dense<0.000000e+00> : vector<128x64xf32>
    %2 = tpu.matmul %0, %1, %cst {dimension_numbers = #tpu.dot_dimension_numbers<[1], [0], [0], [1], [0, 0, 1, 1], [], []>} : vector<128x16xf32>, vector<16x64xf32>, vector<128x64xf32> -> vector<128x64xf32>
    %c0_3 = arith.constant 0 : index
    %c0_4 = arith.constant 0 : index
    %3 = vector.load %arg3[%c0_3, %c0_4] : memref<1x64xf32, #tpu.memory_space<vmem>>, vector<1x64xf32>
    %4 = vector.broadcast %3 : vector<1x64xf32> to vector<128x64xf32>
    %5 = arith.addf %2, %4 : vector<128x64xf32>
    %6 = math.absf %5 : vector<128x64xf32>
    %cst_5 = arith.constant 0.000000e+00 : f32
    %7 = vector.broadcast %cst_5 : f32 to vector<128x64xf32>
    %8 = arith.subf %7, %6 : vector<128x64xf32>
    %9 = math.exp %8 : vector<128x64xf32>
    %10 = math.log1p %9 : vector<128x64xf32>
    %cst_6 = arith.constant 0.000000e+00 : f32
    %11 = vector.broadcast %cst_6 : f32 to vector<128x64xf32>
    %12 = arith.maximumf %5, %11 : vector<128x64xf32>
    %13 = arith.addf %10, %12 : vector<128x64xf32>
    %c0_7 = arith.constant 0 : index
    %c0_8 = arith.constant 0 : index
    %14 = vector.load %arg4[%c0_7, %c0_8] : memref<64x128xf32, #tpu.memory_space<vmem>>, vector<64x128xf32>
    %cst_9 = arith.constant dense<0.000000e+00> : vector<128x128xf32>
    %15 = tpu.matmul %13, %14, %cst_9 {dimension_numbers = #tpu.dot_dimension_numbers<[1], [0], [0], [1], [0, 0, 1, 1], [], []>} : vector<128x64xf32>, vector<64x128xf32>, vector<128x128xf32> -> vector<128x128xf32>
    %c0_10 = arith.constant 0 : index
    %c0_11 = arith.constant 0 : index
    %16 = vector.load %arg5[%c0_10, %c0_11] : memref<1x128xf32, #tpu.memory_space<vmem>>, vector<1x128xf32>
    %17 = vector.broadcast %16 : vector<1x128xf32> to vector<128x128xf32>
    %18 = arith.addf %15, %17 : vector<128x128xf32>
    %19 = math.absf %18 : vector<128x128xf32>
    %cst_12 = arith.constant 0.000000e+00 : f32
    %20 = vector.broadcast %cst_12 : f32 to vector<128x128xf32>
    %21 = arith.subf %20, %19 : vector<128x128xf32>
    %22 = math.exp %21 : vector<128x128xf32>
    %23 = math.log1p %22 : vector<128x128xf32>
    %cst_13 = arith.constant 0.000000e+00 : f32
    %24 = vector.broadcast %cst_13 : f32 to vector<128x128xf32>
    %25 = arith.maximumf %18, %24 : vector<128x128xf32>
    %26 = arith.addf %23, %25 : vector<128x128xf32>
    %c0_14 = arith.constant 0 : index
    %c0_15 = arith.constant 0 : index
    %27 = vector.load %arg6[%c0_14, %c0_15] : memref<128x256xf32, #tpu.memory_space<vmem>>, vector<128x256xf32>
    %cst_16 = arith.constant dense<0.000000e+00> : vector<128x256xf32>
    %28 = tpu.matmul %26, %27, %cst_16 {dimension_numbers = #tpu.dot_dimension_numbers<[1], [0], [0], [1], [0, 0, 1, 1], [], []>} : vector<128x128xf32>, vector<128x256xf32>, vector<128x256xf32> -> vector<128x256xf32>
    %c0_17 = arith.constant 0 : index
    %c0_18 = arith.constant 0 : index
    %29 = vector.load %arg7[%c0_17, %c0_18] : memref<1x256xf32, #tpu.memory_space<vmem>>, vector<1x256xf32>
    %30 = vector.broadcast %29 : vector<1x256xf32> to vector<128x256xf32>
    %31 = arith.addf %28, %30 : vector<128x256xf32>
    %cst_19 = arith.constant dense<0xFF800000> : vector<128xf32>
    %32 = vector.multi_reduction <maximumf>, %31, %cst_19 [1] : vector<128x256xf32> to vector<128xf32>
    %33 = vector.shape_cast %32 : vector<128xf32> to vector<128x1xf32>
    %34 = vector.broadcast %33 : vector<128x1xf32> to vector<128x256xf32>
    %35 = arith.subf %31, %34 : vector<128x256xf32>
    %36 = math.exp %35 : vector<128x256xf32>
    %cst_20 = arith.constant dense<0.000000e+00> : vector<128xf32>
    %37 = vector.multi_reduction <add>, %36, %cst_20 [1] : vector<128x256xf32> to vector<128xf32>
    %38 = vector.shape_cast %37 : vector<128xf32> to vector<128x1xf32>
    %39 = tpu.reciprocal %38 : vector<128x1xf32> -> vector<128x1xf32>
    %40 = vector.broadcast %39 : vector<128x1xf32> to vector<128x256xf32>
    %41 = arith.mulf %36, %40 : vector<128x256xf32>
    %c0_21 = arith.constant 0 : index
    %c0_22 = arith.constant 0 : index
    %42 = vector.load %arg8[%c0_21, %c0_22] : memref<128x256xf32, #tpu.memory_space<vmem>>, vector<128x256xf32>
    tpu.vector_store %arg8[%c0_21, %c0_22], %41 {strides = array<i32>} : memref<128x256xf32, #tpu.memory_space<vmem>>, vector<128x256xf32>,
    return
  }
  func.func @transform_0(%arg0: i32) -> (i32, i32) {
    %c0_i32 = arith.constant 0 : i32
    %c0_i32_0 = arith.constant 0 : i32
    return %arg0, %c0_i32 : i32, i32
  }
  func.func @transform_1(%arg0: i32) -> (i32, i32) {
    %c0_i32 = arith.constant 0 : i32
    %c0_i32_0 = arith.constant 0 : i32
    %c0_i32_1 = arith.constant 0 : i32
    return %c0_i32, %c0_i32_0 : i32, i32
  }
  func.func @transform_2(%arg0: i32) -> (i32, i32) {
    %c0_i32 = arith.constant 0 : i32
    %c0_i32_0 = arith.constant 0 : i32
    %c0_i32_1 = arith.constant 0 : i32
    return %c0_i32, %c0_i32_0 : i32, i32
  }
  func.func @transform_3(%arg0: i32) -> (i32, i32) {
    %c0_i32 = arith.constant 0 : i32
    %c0_i32_0 = arith.constant 0 : i32
    %c0_i32_1 = arith.constant 0 : i32
    return %c0_i32, %c0_i32_0 : i32, i32
  }
  func.func @transform_4(%arg0: i32) -> (i32, i32) {
    %c0_i32 = arith.constant 0 : i32
    %c0_i32_0 = arith.constant 0 : i32
    %c0_i32_1 = arith.constant 0 : i32
    return %c0_i32, %c0_i32_0 : i32, i32
  }
  func.func @transform_5(%arg0: i32) -> (i32, i32) {
    %c0_i32 = arith.constant 0 : i32
    %c0_i32_0 = arith.constant 0 : i32
    %c0_i32_1 = arith.constant 0 : i32
    return %c0_i32, %c0_i32_0 : i32, i32
  }
  func.func @transform_6(%arg0: i32) -> (i32, i32) {
    %c0_i32 = arith.constant 0 : i32
    %c0_i32_0 = arith.constant 0 : i32
    %c0_i32_1 = arith.constant 0 : i32
    return %c0_i32, %c0_i32_0 : i32, i32
  }
  func.func @transform_7(%arg0: i32) -> (i32, i32) {
    %c0_i32 = arith.constant 0 : i32
    %c0_i32_0 = arith.constant 0 : i32
    return %arg0, %c0_i32 : i32, i32
  }
}

</mosaic_0001>

<llo_original>
// kernel: tpu_custom_call.1
$region0: #{tpu_custom_call.1}
  #allocation0 [shape = 'u32[]', space=smem, size = 0x4, offset = 0x4, fixed_abs, tag = 'smem constant byte address 0x4 - core index']
  #allocation1 [shape = 'u32[144,128]{1,0:T(1,128)}', space=vmem, size = 0x12000, scoped, tag = 'internal scratch']
  %s0 = inlined_call_operand.vmem [shape: f32[256,16], index: 0, kind: input, shape index: {}]
  %s1 = inlined_call_operand.vmem [shape: f32[16,64], index: 1, kind: input, shape index: {}]
  %s2 = inlined_call_operand.vmem [shape: f32[1,64], index: 2, kind: input, shape index: {}]
  %s3 = inlined_call_operand.hbm [shape: f32[64,128], index: 3, kind: input, shape index: {}]
  %s4 = inlined_call_operand.vmem [shape: f32[1,128], index: 4, kind: input, shape index: {}]
  %s5 = inlined_call_operand.vmem [shape: f32[128,256], index: 5, kind: input, shape index: {}]
  %s6 = inlined_call_operand.vmem [shape: f32[1,256], index: 6, kind: input, shape index: {}]
  %s7 = inlined_call_operand.hbm [shape: f32[256,256], index: 7, kind: output, shape index: {}]
  %s8 = sld [smem:[#allocation0]]
  $region65: #{tpu_custom_call.1} parent=0
    _
  %s10 = ssub.s32 1, %s8
  %s11 = scalar_select 0, %s10, %s8
  $region1: #{tpu_custom_call.1} parent=0
    #allocation2 [shape = 'u8[32768]{0}', space=vmem, size = 0x8000, scoped, tag = 'input window, operand 3, single buffered']
    #allocation3 [shape = 's32[2]{0}', space=sflag, size = 0x8, scoped, tag = 'scoped memory for tpu_custom_call.1']
    #allocation4 [shape = 's32[2]{0}', space=sflag, size = 0x8, scoped, tag = 'scoped memory for tpu_custom_call.1']
    #allocation5 [shape = 'u8[262144]{0}', space=vmem, size = 0x40000, scoped, tag = 'output window, operand 0']
    %12 = vsyncpa [#allocation3], 0
    %13 = vsyncpa [#allocation4], 0
    %s14 = scalar_lea.sflag [#allocation4], 1
    %15 = vsyncpa %s14, 0
    loop: start=0, step=1, limit=4
    $region2: #{tpu_custom_call.1} parent=1 // loop_pre_header
      _
    $region3: #{tpu_custom_call.1} parent=1 // loop_header
      %s17 = sphi 0, %s21
      %p18 = scmp.ge.s32.totalorder %s17, 4
      %s27 = sphi 0, %s29
      %s30 = sphi 0, %s27
      %s31 = sphi 0, %s30
      %s47 = sphi 0, %s31
      %s51 = sphi 0, %s51
      %s53 = sphi 0, %s51
      %s54 = sphi 0, %s53
      %s68 = sphi 0, %s54
      %s72 = sphi 0, %s72
      %s74 = sphi 0, %s72
      %s75 = sphi 0, %s74
      %s89 = sphi 0, %s75
      %s93 = sphi 0, %s93
      %s95 = sphi 0, %s93
      %s96 = sphi 0, %s95
      %s110 = sphi 0, %s96
      %s114 = sphi 0, %s114
      %s116 = sphi 0, %s114
      %s117 = sphi 0, %s116
      %s131 = sphi 0, %s117
      %s135 = sphi 0, %s135
      %s137 = sphi 0, %s135
      %s138 = sphi 0, %s137
      %s152 = sphi 0, %s138
      %s156 = sphi 0, %s156
      %s158 = sphi 0, %s156
      %s159 = sphi 0, %s158
      %s173 = sphi 0, %s159
      %s179 = sphi 0, %s181
      %s182 = sphi 0, %s179
      %s183 = sphi 0, %s182
      %s199 = sphi 0, %s183
    $region4: #{tpu_custom_call.1} parent=1 // loop_header_branch
      %20 = sbr.rel (%p18) target = $region8
    $region5: #{tpu_custom_call.1} parent=1 // loop_body
      %s22 = ssub.s32 %s17, 1
      %s23 = ssub.s32 %s17, 2
      %s24 = sadd.s32 %s17, 1
      %s25 = ssub.s32 %s17, %s24
      %p26 = scmp.eq.s32.totalorder %s25, 0
      %s28 = sadd.s32 %s27, 1
      %s29 = scalar_select %p26, %s27, %s28
      %p32 = pneg %p26
      %p33 = scmp.eq.s32.totalorder %s17, 1
      %p34 = por %p32, %p33
      %p35 = scmp.ne.s32.totalorder %s27, %s30
      %p36 = scmp.eq.s32.totalorder %s17, 0
      %p37 = por %p35, %p36
      %p38 = scmp.ne.s32.totalorder %s27, %s30
      %p39 = scmp.eq.s32.totalorder %s22, 1
      %p40 = por %p38, %p39
      %p41 = scmp.ne.s32.totalorder %s30, %s31
      %p42 = scmp.eq.s32.totalorder %s22, 0
      %p43 = por %p41, %p42
      %p44 = scmp.ne.s32.totalorder %s30, %s31
      %p45 = scmp.eq.s32.totalorder %s23, 1
      %p46 = por %p44, %p45
      %p48 = scmp.ne.s32.totalorder %s31, %s47
      %p49 = scmp.eq.s32.totalorder %s23, 0
      %p50 = por %p48, %p49
      %s52 = sadd.s32 %s51, 1
      %p55 = scmp.eq.s32.totalorder %s17, 1
      %p56 = scmp.ne.s32.totalorder %s51, %s53
      %p57 = scmp.eq.s32.totalorder %s17, 0
      %p58 = por %p56, %p57
      %p59 = scmp.ne.s32.totalorder %s51, %s53
      %p60 = scmp.eq.s32.totalorder %s22, 1
      %p61 = por %p59, %p60
      %p62 = scmp.ne.s32.totalorder %s53, %s54
      %p63 = scmp.eq.s32.totalorder %s22, 0
      %p64 = por %p62, %p63
      %p65 = scmp.ne.s32.totalorder %s53, %s54
      %p66 = scmp.eq.s32.totalorder %s23, 1
      %p67 = por %p65, %p66
      %p69 = scmp.ne.s32.totalorder %s54, %s68
      %p70 = scmp.eq.s32.totalorder %s23, 0
      %p71 = por %p69, %p70
      %s73 = sadd.s32 %s72, 1
      %p76 = scmp.eq.s32.totalorder %s17, 1
      %p77 = scmp.ne.s32.totalorder %s72, %s74
      %p78 = scmp.eq.s32.totalorder %s17, 0
      %p79 = por %p77, %p78
      %p80 = scmp.ne.s32.totalorder %s72, %s74
      %p81 = scmp.eq.s32.totalorder %s22, 1
      %p82 = por %p80, %p81
      %p83 = scmp.ne.s32.totalorder %s74, %s75
      %p84 = scmp.eq.s32.totalorder %s22, 0
      %p85 = por %p83, %p84
      %p86 = scmp.ne.s32.totalorder %s74, %s75
      %p87 = scmp.eq.s32.totalorder %s23, 1
      %p88 = por %p86, %p87
      %p90 = scmp.ne.s32.totalorder %s75, %s89
      %p91 = scmp.eq.s32.totalorder %s23, 0
      %p92 = por %p90, %p91
      %s94 = sadd.s32 %s93, 1
      %p97 = scmp.eq.s32.totalorder %s17, 1
      %p98 = scmp.ne.s32.totalorder %s93, %s95
      %p99 = scmp.eq.s32.totalorder %s17, 0
      %p100 = por %p98, %p99
      %p101 = scmp.ne.s32.totalorder %s93, %s95
      %p102 = scmp.eq.s32.totalorder %s22, 1
      %p103 = por %p101, %p102
      %p104 = scmp.ne.s32.totalorder %s95, %s96
      %p105 = scmp.eq.s32.totalorder %s22, 0
      %p106 = por %p104, %p105
      %p107 = scmp.ne.s32.totalorder %s95, %s96
      %p108 = scmp.eq.s32.totalorder %s23, 1
      %p109 = por %p107, %p108
      %p111 = scmp.ne.s32.totalorder %s96, %s110
      %p112 = scmp.eq.s32.totalorder %s23, 0
      %p113 = por %p111, %p112
      %s115 = sadd.s32 %s114, 1
      %p118 = scmp.eq.s32.totalorder %s17, 1
      %p119 = scmp.ne.s32.totalorder %s114, %s116
      %p120 = scmp.eq.s32.totalorder %s17, 0
      %p121 = por %p119, %p120
      %p122 = scmp.ne.s32.totalorder %s114, %s116
      %p123 = scmp.eq.s32.totalorder %s22, 1
      %p124 = por %p122, %p123
      %p125 = scmp.ne.s32.totalorder %s116, %s117
      %p126 = scmp.eq.s32.totalorder %s22, 0
      %p127 = por %p125, %p126
      %p128 = scmp.ne.s32.totalorder %s116, %s117
      %p129 = scmp.eq.s32.totalorder %s23, 1
      %p130 = por %p128, %p129
      %p132 = scmp.ne.s32.totalorder %s117, %s131
      %p133 = scmp.eq.s32.totalorder %s23, 0
      %p134 = por %p132, %p133
      %s136 = sadd.s32 %s135, 1
      %p139 = scmp.eq.s32.totalorder %s17, 1
      %p140 = scmp.ne.s32.totalorder %s135, %s137
      %p141 = scmp.eq.s32.totalorder %s17, 0
      %p142 = por %p140, %p141
      %p143 = scmp.ne.s32.totalorder %s135, %s137
      %p144 = scmp.eq.s32.totalorder %s22, 1
      %p145 = por %p143, %p144
      %p146 = scmp.ne.s32.totalorder %s137, %s138
      %p147 = scmp.eq.s32.totalorder %s22, 0
      %p148 = por %p146, %p147
      %p149 = scmp.ne.s32.totalorder %s137, %s138
      %p150 = scmp.eq.s32.totalorder %s23, 1
      %p151 = por %p149, %p150
      %p153 = scmp.ne.s32.totalorder %s138, %s152
      %p154 = scmp.eq.s32.totalorder %s23, 0
      %p155 = por %p153, %p154
      %s157 = sadd.s32 %s156, 1
      %p160 = scmp.eq.s32.totalorder %s17, 1
      %p161 = scmp.ne.s32.totalorder %s156, %s158
      %p162 = scmp.eq.s32.totalorder %s17, 0
      %p163 = por %p161, %p162
      %p164 = scmp.ne.s32.totalorder %s156, %s158
      %p165 = scmp.eq.s32.totalorder %s22, 1
      %p166 = por %p164, %p165
      %p167 = scmp.ne.s32.totalorder %s158, %s159
      %p168 = scmp.eq.s32.totalorder %s22, 0
      %p169 = por %p167, %p168
      %p170 = scmp.ne.s32.totalorder %s158, %s159
      %p171 = scmp.eq.s32.totalorder %s23, 1
      %p172 = por %p170, %p171
      %p174 = scmp.ne.s32.totalorder %s159, %s173
      %p175 = scmp.eq.s32.totalorder %s23, 0
      %p176 = por %p174, %p175
      %s177 = ssub.s32 %s17, %s24
      %p178 = scmp.eq.s32.totalorder %s177, 0
      %s180 = sadd.s32 %s179, 1
      %s181 = scalar_select %p178, %s179, %s180
      %p184 = pneg %p178
      %p185 = scmp.eq.s32.totalorder %s17, 1
      %p186 = por %p184, %p185
      %p187 = scmp.ne.s32.totalorder %s179, %s182
      %p188 = scmp.eq.s32.totalorder %s17, 0
      %p189 = por %p187, %p188
      %p190 = scmp.ne.s32.totalorder %s179, %s182
      %p191 = scmp.eq.s32.totalorder %s22, 1
      %p192 = por %p190, %p191
      %p193 = scmp.ne.s32.totalorder %s182, %s183
      %p194 = scmp.eq.s32.totalorder %s22, 0
      %p195 = por %p193, %p194
      %p196 = scmp.ne.s32.totalorder %s182, %s183
      %p197 = scmp.eq.s32.totalorder %s23, 1
      %p198 = por %p196, %p197
      %p200 = scmp.ne.s32.totalorder %s183, %s199
      %p201 = scmp.eq.s32.totalorder %s23, 0
      %p202 = por %p200, %p201
      %p203 = scmp.le.s32.totalorder 1, %s17
      %p204 = scmp.lt.s32.totalorder %s17, 3
      %p205 = pnand %p203, %p204
      %p206 = pneg %p205
      // Predicated region
      $region9: #{tpu_custom_call.1} parent=5 // pred_check
        _
      $region10: #{tpu_custom_call.1} parent=5 // pred_check_branch
        %208 = sbr.rel (%p205) target = $region12
      $region11: #{tpu_custom_call.1} parent=5 // pred_region
        %s209 = ssub.s32 %s17, 1
        // Predicated region
        $region13: #{tpu_custom_call.1} parent=11 // pred_check
          %p210 = pneg %p64
        $region14: #{tpu_custom_call.1} parent=11 // pred_check_branch
          %212 = sbr.rel (%p210) target = $region16
        $region15: #{tpu_custom_call.1} parent=11 // pred_region
          _
        $region16: #{tpu_custom_call.1} parent=11 // pred_fallthru
          _
        // Predicated region
        $region17: #{tpu_custom_call.1} parent=11 // pred_check
          %p213 = pneg %p85
        $region18: #{tpu_custom_call.1} parent=11 // pred_check_branch
          %215 = sbr.rel (%p213) target = $region20
        $region19: #{tpu_custom_call.1} parent=11 // pred_region
          _
        $region20: #{tpu_custom_call.1} parent=11 // pred_fallthru
          _
        // Predicated region
        $region21: #{tpu_custom_call.1} parent=11 // pred_check
          %p216 = pneg %p106
        $region22: #{tpu_custom_call.1} parent=11 // pred_check_branch
          %218 = sbr.rel (%p216) target = $region24
        $region23: #{tpu_custom_call.1} parent=11 // pred_region
          %s220 = ssub.s32 1024, 1024
          %221 = vsyncadd [#allocation3], %s220
          %s222 = sshll.u32 [#allocation2], 4
          %s223 = int_to_ptr.vmem [resolvable:$true] %s222
          %228 = dma.hbm_to_vmem [thread:$0]  %s3, 1024, %s223, [#allocation3], 128, 128, 8
        $region24: #{tpu_custom_call.1} parent=11 // pred_fallthru
          _
        // Predicated region
        $region25: #{tpu_custom_call.1} parent=11 // pred_check
          %p229 = pneg %p127
        $region26: #{tpu_custom_call.1} parent=11 // pred_check_branch
          %231 = sbr.rel (%p229) target = $region28
        $region27: #{tpu_custom_call.1} parent=11 // pred_region
          _
        $region28: #{tpu_custom_call.1} parent=11 // pred_fallthru
          _
        // Predicated region
        $region29: #{tpu_custom_call.1} parent=11 // pred_check
          %p232 = pneg %p148
        $region30: #{tpu_custom_call.1} parent=11 // pred_check_branch
          %234 = sbr.rel (%p232) target = $region32
        $region31: #{tpu_custom_call.1} parent=11 // pred_region
          _
        $region32: #{tpu_custom_call.1} parent=11 // pred_fallthru
          _
        // Predicated region
        $region33: #{tpu_custom_call.1} parent=11 // pred_check
          %p235 = pneg %p169
        $region34: #{tpu_custom_call.1} parent=11 // pred_check_branch
          %237 = sbr.rel (%p235) target = $region36
        $region35: #{tpu_custom_call.1} parent=11 // pred_region
          _
        $region36: #{tpu_custom_call.1} parent=11 // pred_fallthru
          _
      $region12: #{tpu_custom_call.1} parent=5 // pred_fallthru
        _
      %p238 = scmp.lt.s32.totalorder %s17, 2
      // Predicated region
      $region37: #{tpu_custom_call.1} parent=5 // pred_check
        %p239 = pneg %p238
      $region38: #{tpu_custom_call.1} parent=5 // pred_check_branch
        %241 = sbr.rel (%p239) target = $region40
      $region39: #{tpu_custom_call.1} parent=5 // pred_region
        // Predicated region
        $region41: #{tpu_custom_call.1} parent=39 // pred_check
          %p242 = pneg %p37
        $region42: #{tpu_custom_call.1} parent=39 // pred_check_branch
          %244 = sbr.rel (%p242) target = $region44
        $region43: #{tpu_custom_call.1} parent=39 // pred_region
          %s245 = smul.u32 16, %s17
          %p246 = scmp.lt.s32.totalorder %s245, 31
          %s247 = scalar_select %p246, %s245, 31
          %s248 = smul.addr %s247, 8
          %s249 = scalar_lea.vmem %s0, %s248
          %s250 = smul.u32 16, %s17
        $region44: #{tpu_custom_call.1} parent=39 // pred_fallthru
          _
      $region40: #{tpu_custom_call.1} parent=5 // pred_fallthru
        _
      %p251 = scmp.le.s32.totalorder 1, %s17
      %p252 = scmp.lt.s32.totalorder %s17, 3
      %p253 = pnand %p251, %p252
      %p254 = pneg %p253
      // Predicated region
      $region45: #{tpu_custom_call.1} parent=5 // pred_check
        _
      $region46: #{tpu_custom_call.1} parent=5 // pred_check_branch
        %256 = sbr.rel (%p253) target = $region48
      $region47: #{tpu_custom_call.1} parent=5 // pred_region
        %s257 = ssub.s32 %s17, 1
        // Predicated region
        $region49: #{tpu_custom_call.1} parent=47 // pred_check
          %p258 = pneg %p106
        $region50: #{tpu_custom_call.1} parent=47 // pred_check_branch
          %260 = sbr.rel (%p258) target = $region52
        $region51: #{tpu_custom_call.1} parent=47 // pred_region
          %261 = dma.done [#allocation3], 1024
        $region52: #{tpu_custom_call.1} parent=47 // pred_fallthru
          _
        %s262 = smul.u32 16, %s22
        %p263 = scmp.lt.s32.totalorder %s262, 31
        %s264 = scalar_select %p263, %s262, 31
        %s265 = smul.addr %s264, 8
        %s266 = scalar_lea.vmem %s0, %s265
        %p267 = pneg %p43
        %p268 = pneg %p40
        %p269 = pneg %p64
        %p270 = pneg %p61
        %p271 = pneg %p85
        %p272 = pneg %p82
        %p273 = pneg %p106
        %p274 = pneg %p103
        %p275 = pneg %p127
        %p276 = pneg %p124
        %p277 = pneg %p148
        %p278 = pneg %p145
        %p279 = pneg %p169
        %p280 = pneg %p166
        %p281 = pneg %p195
        %p282 = pneg %p192
        %s283 = sand.u32 %s182, 1
        %s284 = scalar_lea.sflag [#allocation4], %s283
        %s285 = sand.u32 %s182, 1
        %s286 = smul.addr %s285, 256
        %s287 = scalar_lea.vmem [#allocation5], %s286
        %s288 = smul.u32 16, %s22
        %p289 = scmp.lt.s32.totalorder %s288, 31
        %s290 = scalar_select %p289, %s288, 31
        %s291 = smul.addr %s290, 8
        %s292 = scalar_lea.vmem %s0, %s291
        %s293 = smul.u32 16, %s22
        %s294 = smul.u32 16, %s22
        %v295 = vld [vmem:[%s292] sm:$0xff]
        %v296 = vld [vmem:[%s292 + $0x8] sm:$0xff]
        %v297 = vld [vmem:[%s292 + $0x10] sm:$0xff]
        %v298 = vld [vmem:[%s292 + $0x18] sm:$0xff]
        %v299 = vld [vmem:[%s292 + $0x20] sm:$0xff]
        %v300 = vld [vmem:[%s292 + $0x28] sm:$0xff]
        %v301 = vld [vmem:[%s292 + $0x30] sm:$0xff]
        %v302 = vld [vmem:[%s292 + $0x38] sm:$0xff]
        %v303 = vld [vmem:[%s292 + $0x40] sm:$0xff]
        %v304 = vld [vmem:[%s292 + $0x48] sm:$0xff]
        %v305 = vld [vmem:[%s292 + $0x50] sm:$0xff]
        %v306 = vld [vmem:[%s292 + $0x58] sm:$0xff]
        %v307 = vld [vmem:[%s292 + $0x60] sm:$0xff]
        %v308 = vld [vmem:[%s292 + $0x68] sm:$0xff]
        %v309 = vld [vmem:[%s292 + $0x70] sm:$0xff]
        %v310 = vld [vmem:[%s292 + $0x78] sm:$0xff]
        %v311 = vld [vmem:[%s1] sm:$0xff]
        %v312 = vld [vmem:[%s1 + $0x8] sm:$0xff]
        %v313 = vld [vmem:[%s2] sm:$0x1]
        %v315 = vlaneseq
        %v316 = vshrl.u32 %v315, 7
        %v317 = vsub.s32 0, %v316
        %v318 = vrot.slane %v313, %v317
        %vm320 = vcmask 130048
        %v322 = vsel %vm320, %v295, 0
        %v325 = vsel %vm320, %v296, 0
        %v328 = vsel %vm320, %v297, 0
        %v331 = vsel %vm320, %v298, 0
        %v334 = vsel %vm320, %v299, 0
        %v337 = vsel %vm320, %v300, 0
        %v340 = vsel %vm320, %v301, 0
        %v343 = vsel %vm320, %v302, 0
        %v346 = vsel %vm320, %v303, 0
        %v349 = vsel %vm320, %v304, 0
        %v352 = vsel %vm320, %v305, 0
        %v355 = vsel %vm320, %v306, 0
        %v358 = vsel %vm320, %v307, 0
        %v361 = vsel %vm320, %v308, 0
        %v364 = vsel %vm320, %v309, 0
        %v367 = vsel %vm320, %v310, 0
        %369 = vmatprep.subr.mxu0 0.0
        %370 = vmatpush1.msra.mxu0 %v311
        %371 = vmatprep.subr.mxu0 0.0
        %372 = vmatpush1.msra.mxu0 %v312
        %373 = vmatprep.subr.mxu0 0.0
        %374 = vmatpush1.msra.mxu0 0.0
        %375 = vmatprep.subr.mxu0 0.0
        %376 = vmatpush1.msra.mxu0 0.0
        %377 = vmatprep.subr.mxu0 0.0
        %378 = vmatpush1.msra.mxu0 0.0
        %379 = vmatprep.subr.mxu0 0.0
        %380 = vmatpush1.msra.mxu0 0.0
        %381 = vmatprep.subr.mxu0 0.0
        %382 = vmatpush1.msra.mxu0 0.0
        %383 = vmatprep.subr.mxu0 0.0
        %384 = vmatpush1.msra.mxu0 0.0
        %385 = vmatprep.subr.mxu0 0.0
        %386 = vmatpush1.msra.mxu0 0.0
        %387 = vmatprep.subr.mxu0 0.0
        %388 = vmatpush1.msra.mxu0 0.0
        %389 = vmatprep.subr.mxu0 0.0
        %390 = vmatpush1.msra.mxu0 0.0
        %391 = vmatprep.subr.mxu0 0.0
        %392 = vmatpush1.msra.mxu0 0.0
        %393 = vmatprep.subr.mxu0 0.0
        %394 = vmatpush1.msra.mxu0 0.0
        %395 = vmatprep.subr.mxu0 0.0
        %396 = vmatpush1.msra.mxu0 0.0
        %397 = vmatprep.subr.mxu0 0.0
        %398 = vmatpush1.msra.mxu0 0.0
        %399 = vmatprep.subr.mxu0 0.0
        %400 = vmatpush1.msra.mxu0 0.0
        %401 = vmatprep.subr.mxu0 0.0
        %402 = vmatpush1.msra.mxu0 0.0
        %403 = vmatprep.subr.mxu0 0.0
        %404 = vmatpush1.msra.mxu0 0.0
        %405 = vmatprep.subr.mxu0 0.0
        %406 = vmatpush1.msra.mxu0 0.0
        %407 = vmatprep.subr.mxu0 0.0
        %408 = vmatpush1.msra.mxu0 0.0
        %409 = vmatprep.subr.mxu0 0.0
        %410 = vmatpush1.msra.mxu0 0.0
        %411 = vmatprep.subr.mxu0 0.0
        %412 = vmatpush1.msra.mxu0 0.0
        %413 = vmatprep.subr.mxu0 0.0
        %414 = vmatpush1.msra.mxu0 0.0
        %415 = vmatprep.subr.mxu0 0.0
        %416 = vmatpush1.msra.mxu0 0.0
        %417 = vmatprep.subr.mxu0 0.0
        %418 = vmatpush1.msra.mxu0 0.0
        %419 = vmatprep.subr.mxu0 0.0
        %420 = vmatpush1.msra.mxu0 0.0
        %421 = vmatprep.subr.mxu0 0.0
        %422 = vmatpush1.msra.mxu0 0.0
        %423 = vmatprep.subr.mxu0 0.0
        %424 = vmatpush1.msra.mxu0 0.0
        %425 = vmatprep.subr.mxu0 0.0
        %426 = vmatpush1.msra.mxu0 0.0
        %427 = vmatprep.subr.mxu0 0.0
        %428 = vmatpush1.msra.mxu0 0.0
        %429 = vmatprep.subr.mxu0 0.0
        %430 = vmatpush1.msra.mxu0 0.0
        %431 = vmatprep.subr.mxu0 0.0
        %432 = vmatpush1.msra.mxu0 0.0
        %433 = vmatprep.mubr.f32.mxu0 0.0
        %434 = vmatmul.mubr.f32.gmra.mrb[0].mxu0 %v322
        %v435 = vpop.f32.mrb[0].mxu0
        %v436 = vadd.f32 %v318, %v435
        %v437 = vpop.f32.mrb[0].mxu0
        %438 = vmatprep.mubr.f32.mxu0 0.0
        %439 = vmatmul.mubr.f32.gmra.mrb[0].mxu0 %v325
        %v440 = vpop.f32.mrb[0].mxu0
        %v441 = vadd.f32 %v318, %v440
        %v442 = vpop.f32.mrb[0].mxu0
        %443 = vmatprep.mubr.f32.mxu0 0.0
        %444 = vmatmul.mubr.f32.gmra.mrb[0].mxu0 %v328
        %v445 = vpop.f32.mrb[0].mxu0
        %v446 = vadd.f32 %v318, %v445
        %v447 = vpop.f32.mrb[0].mxu0
        %448 = vmatprep.mubr.f32.mxu0 0.0
        %449 = vmatmul.mubr.f32.gmra.mrb[0].mxu0 %v331
        %v450 = vpop.f32.mrb[0].mxu0
        %v451 = vadd.f32 %v318, %v450
        %v452 = vpop.f32.mrb[0].mxu0
        %453 = vmatprep.mubr.f32.mxu0 0.0
        %454 = vmatmul.mubr.f32.gmra.mrb[0].mxu0 %v334
        %v455 = vpop.f32.mrb[0].mxu0
        %v456 = vadd.f32 %v318, %v455
        %v457 = vpop.f32.mrb[0].mxu0
        %458 = vmatprep.mubr.f32.mxu0 0.0
        %459 = vmatmul.mubr.f32.gmra.mrb[0].mxu0 %v337
        %v460 = vpop.f32.mrb[0].mxu0
        %v461 = vadd.f32 %v318, %v460
        %v462 = vpop.f32.mrb[0].mxu0
        %463 = vmatprep.mubr.f32.mxu0 0.0
        %464 = vmatmul.mubr.f32.gmra.mrb[0].mxu0 %v340
        %v465 = vpop.f32.mrb[0].mxu0
        %v466 = vadd.f32 %v318, %v465
        %v467 = vpop.f32.mrb[0].mxu0
        %468 = vmatprep.mubr.f32.mxu0 0.0
        %469 = vmatmul.mubr.f32.gmra.mrb[0].mxu0 %v343
        %v470 = vpop.f32.mrb[0].mxu0
        %v471 = vadd.f32 %v318, %v470
        %v472 = vpop.f32.mrb[0].mxu0
        %473 = vmatprep.mubr.f32.mxu0 0.0
        %474 = vmatmul.mubr.f32.gmra.mrb[0].mxu0 %v346
        %v475 = vpop.f32.mrb[0].mxu0
        %v476 = vadd.f32 %v318, %v475
        %v477 = vpop.f32.mrb[0].mxu0
        %478 = vmatprep.mubr.f32.mxu0 0.0
        %479 = vmatmul.mubr.f32.gmra.mrb[0].mxu0 %v349
        %v480 = vpop.f32.mrb[0].mxu0
        %v481 = vadd.f32 %v318, %v480
        %v482 = vpop.f32.mrb[0].mxu0
        %483 = vmatprep.mubr.f32.mxu0 0.0
        %484 = vmatmul.mubr.f32.gmra.mrb[0].mxu0 %v352
        %v485 = vpop.f32.mrb[0].mxu0
        %v486 = vadd.f32 %v318, %v485
        %v487 = vpop.f32.mrb[0].mxu0
        %488 = vmatprep.mubr.f32.mxu0 0.0
        %489 = vmatmul.mubr.f32.gmra.mrb[0].mxu0 %v355
        %v490 = vpop.f32.mrb[0].mxu0
        %v491 = vadd.f32 %v318, %v490
        %v492 = vpop.f32.mrb[0].mxu0
        %493 = vmatprep.mubr.f32.mxu0 0.0
        %494 = vmatmul.mubr.f32.gmra.mrb[0].mxu0 %v358
        %v495 = vpop.f32.mrb[0].mxu0
        %v496 = vadd.f32 %v318, %v495
        %v497 = vpop.f32.mrb[0].mxu0
        %498 = vmatprep.mubr.f32.mxu0 0.0
        %499 = vmatmul.mubr.f32.gmra.mrb[0].mxu0 %v361
        %v500 = vpop.f32.mrb[0].mxu0
        %v501 = vadd.f32 %v318, %v500
        %v502 = vpop.f32.mrb[0].mxu0
        %503 = vmatprep.mubr.f32.mxu0 0.0
        %504 = vmatmul.mubr.f32.gmra.mrb[0].mxu0 %v364
        %v505 = vpop.f32.mrb[0].mxu0
        %v506 = vadd.f32 %v318, %v505
        %v507 = vpop.f32.mrb[0].mxu0
        %508 = vmatprep.mubr.f32.mxu0 0.0
        %509 = vmatmul.mubr.f32.gmra.mrb[0].mxu0 %v367
        %v510 = vpop.f32.mrb[0].mxu0
        %v511 = vadd.f32 %v318, %v510
        %v512 = vpop.f32.mrb[0].mxu0
        %513 = vdwg.mxu0
        %v514 = vand.u32 2147483647, %v436
        %v515 = vand.u32 2147483647, %v441
        %v516 = vand.u32 2147483647, %v446
        %v517 = vand.u32 2147483647, %v451
        %v518 = vand.u32 2147483647, %v456
        %v519 = vand.u32 2147483647, %v461
        %v520 = vand.u32 2147483647, %v466
        %v521 = vand.u32 2147483647, %v471
        %v522 = vand.u32 2147483647, %v476
        %v523 = vand.u32 2147483647, %v481
        %v524 = vand.u32 2147483647, %v486
        %v525 = vand.u32 2147483647, %v491
        %v526 = vand.u32 2147483647, %v496
        %v527 = vand.u32 2147483647, %v501
        %v528 = vand.u32 2147483647, %v506
        %v529 = vand.u32 2147483647, %v511
        %v530 = vsub.f32 0.0, %v514
        %v531 = vsub.f32 0.0, %v515
        %v532 = vsub.f32 0.0, %v516
        %v533 = vsub.f32 0.0, %v517
        %v534 = vsub.f32 0.0, %v518
        %v535 = vsub.f32 0.0, %v519
        %v536 = vsub.f32 0.0, %v520
        %v537 = vsub.f32 0.0, %v521
        %v538 = vsub.f32 0.0, %v522
        %v539 = vsub.f32 0.0, %v523
        %v540 = vsub.f32 0.0, %v524
        %v541 = vsub.f32 0.0, %v525
        %v542 = vsub.f32 0.0, %v526
        %v543 = vsub.f32 0.0, %v527
        %v544 = vsub.f32 0.0, %v528
        %v545 = vsub.f32 0.0, %v529
        %v546 = vmul.f32 %v530, 1.442695
        %v547 = vpow.pop %v546
        %v548 = vmul.f32 %v531, 1.442695
        %v549 = vpow.pop %v548
        %v550 = vmul.f32 %v532, 1.442695
        %v551 = vpow.pop %v550
        %v552 = vmul.f32 %v533, 1.442695
        %v553 = vpow.pop %v552
        %v554 = vmul.f32 %v534, 1.442695
        %v555 = vpow.pop %v554
        %v556 = vmul.f32 %v535, 1.442695
        %v557 = vpow.pop %v556
        %v558 = vmul.f32 %v536, 1.442695
        %v559 = vpow.pop %v558
        %v560 = vmul.f32 %v537, 1.442695
        %v561 = vpow.pop %v560
        %v562 = vmul.f32 %v538, 1.442695
        %v563 = vpow.pop %v562
        %v564 = vmul.f32 %v539, 1.442695
        %v565 = vpow.pop %v564
        %v566 = vmul.f32 %v540, 1.442695
        %v567 = vpow.pop %v566
        %v568 = vmul.f32 %v541, 1.442695
        %v569 = vpow.pop %v568
        %v570 = vmul.f32 %v542, 1.442695
        %v571 = vpow.pop %v570
        %v572 = vmul.f32 %v543, 1.442695
        %v573 = vpow.pop %v572
        %v574 = vmul.f32 %v544, 1.442695
        %v575 = vpow.pop %v574
        %v576 = vmul.f32 %v545, 1.442695
        %v577 = vpow.pop %v576
        %v578 = vadd.f32 %v547, 1.0
        %v579 = vlog2.pop %v578
        %v580 = vmul.f32 %v579, 0.6931472
        %v581 = vmul.f32 -0.5, %v547
        %v582 = vadd.f32 %v581, 1.0
        %v583 = vmul.f32 %v582, %v547
        %v584 = vand.u32 2147483647, %v547
        %vm585 = vcmp.lt.f32.partialorder %v584, 0.0004427343
        %v586 = vsel %vm585, %v583, %v580
        %v587 = vadd.f32 %v549, 1.0
        %v588 = vlog2.pop %v587
        %v589 = vmul.f32 %v588, 0.6931472
        %v590 = vmul.f32 -0.5, %v549
        %v591 = vadd.f32 %v590, 1.0
        %v592 = vmul.f32 %v591, %v549
        %v593 = vand.u32 2147483647, %v549
        %vm594 = vcmp.lt.f32.partialorder %v593, 0.0004427343
        %v595 = vsel %vm594, %v592, %v589
        %v596 = vadd.f32 %v551, 1.0
        %v597 = vlog2.pop %v596
        %v598 = vmul.f32 %v597, 0.6931472
        %v599 = vmul.f32 -0.5, %v551
        %v600 = vadd.f32 %v599, 1.0
        %v601 = vmul.f32 %v600, %v551
        %v602 = vand.u32 2147483647, %v551
        %vm603 = vcmp.lt.f32.partialorder %v602, 0.0004427343
        %v604 = vsel %vm603, %v601, %v598
        %v605 = vadd.f32 %v553, 1.0
        %v606 = vlog2.pop %v605
        %v607 = vmul.f32 %v606, 0.6931472
        %v608 = vmul.f32 -0.5, %v553
        %v609 = vadd.f32 %v608, 1.0
        %v610 = vmul.f32 %v609, %v553
        %v611 = vand.u32 2147483647, %v553
        %vm612 = vcmp.lt.f32.partialorder %v611, 0.0004427343
        %v613 = vsel %vm612, %v610, %v607
        %v614 = vadd.f32 %v555, 1.0
        %v615 = vlog2.pop %v614
        %v616 = vmul.f32 %v615, 0.6931472
        %v617 = vmul.f32 -0.5, %v555
        %v618 = vadd.f32 %v617, 1.0
        %v619 = vmul.f32 %v618, %v555
        %v620 = vand.u32 2147483647, %v555
        %vm621 = vcmp.lt.f32.partialorder %v620, 0.0004427343
        %v622 = vsel %vm621, %v619, %v616
        %v623 = vadd.f32 %v557, 1.0
        %v624 = vlog2.pop %v623
        %v625 = vmul.f32 %v624, 0.6931472
        %v626 = vmul.f32 -0.5, %v557
        %v627 = vadd.f32 %v626, 1.0
        %v628 = vmul.f32 %v627, %v557
        %v629 = vand.u32 2147483647, %v557
        %vm630 = vcmp.lt.f32.partialorder %v629, 0.0004427343
        %v631 = vsel %vm630, %v628, %v625
        %v632 = vadd.f32 %v559, 1.0
        %v633 = vlog2.pop %v632
        %v634 = vmul.f32 %v633, 0.6931472
        %v635 = vmul.f32 -0.5, %v559
        %v636 = vadd.f32 %v635, 1.0
        %v637 = vmul.f32 %v636, %v559
        %v638 = vand.u32 2147483647, %v559
        %vm639 = vcmp.lt.f32.partialorder %v638, 0.0004427343
        %v640 = vsel %vm639, %v637, %v634
        %v641 = vadd.f32 %v561, 1.0
        %v642 = vlog2.pop %v641
        %v643 = vmul.f32 %v642, 0.6931472
        %v644 = vmul.f32 -0.5, %v561
        %v645 = vadd.f32 %v644, 1.0
        %v646 = vmul.f32 %v645, %v561
        %v647 = vand.u32 2147483647, %v561
        %vm648 = vcmp.lt.f32.partialorder %v647, 0.0004427343
        %v649 = vsel %vm648, %v646, %v643
        %v650 = vadd.f32 %v563, 1.0
        %v651 = vlog2.pop %v650
        %v652 = vmul.f32 %v651, 0.6931472
        %v653 = vmul.f32 -0.5, %v563
        %v654 = vadd.f32 %v653, 1.0
        %v655 = vmul.f32 %v654, %v563
        %v656 = vand.u32 2147483647, %v563
        %vm657 = vcmp.lt.f32.partialorder %v656, 0.0004427343
        %v658 = vsel %vm657, %v655, %v652
        %v659 = vadd.f32 %v565, 1.0
        %v660 = vlog2.pop %v659
        %v661 = vmul.f32 %v660, 0.6931472
        %v662 = vmul.f32 -0.5, %v565
        %v663 = vadd.f32 %v662, 1.0
        %v664 = vmul.f32 %v663, %v565
        %v665 = vand.u32 2147483647, %v565
        %vm666 = vcmp.lt.f32.partialorder %v665, 0.0004427343
        %v667 = vsel %vm666, %v664, %v661
        %v668 = vadd.f32 %v567, 1.0
        %v669 = vlog2.pop %v668
        %v670 = vmul.f32 %v669, 0.6931472
        %v671 = vmul.f32 -0.5, %v567
        %v672 = vadd.f32 %v671, 1.0
        %v673 = vmul.f32 %v672, %v567
        %v674 = vand.u32 2147483647, %v567
        %vm675 = vcmp.lt.f32.partialorder %v674, 0.0004427343
        %v676 = vsel %vm675, %v673, %v670
        %v677 = vadd.f32 %v569, 1.0
        %v678 = vlog2.pop %v677
        %v679 = vmul.f32 %v678, 0.6931472
        %v680 = vmul.f32 -0.5, %v569
        %v681 = vadd.f32 %v680, 1.0
        %v682 = vmul.f32 %v681, %v569
        %v683 = vand.u32 2147483647, %v569
        %vm684 = vcmp.lt.f32.partialorder %v683, 0.0004427343
        %v685 = vsel %vm684, %v682, %v679
        %v686 = vadd.f32 %v571, 1.0
        %v687 = vlog2.pop %v686
        %v688 = vmul.f32 %v687, 0.6931472
        %v689 = vmul.f32 -0.5, %v571
        %v690 = vadd.f32 %v689, 1.0
        %v691 = vmul.f32 %v690, %v571
        %v692 = vand.u32 2147483647, %v571
        %vm693 = vcmp.lt.f32.partialorder %v692, 0.0004427343
        %v694 = vsel %vm693, %v691, %v688
        %v695 = vadd.f32 %v573, 1.0
        %v696 = vlog2.pop %v695
        %v697 = vmul.f32 %v696, 0.6931472
        %v698 = vmul.f32 -0.5, %v573
        %v699 = vadd.f32 %v698, 1.0
        %v700 = vmul.f32 %v699, %v573
        %v701 = vand.u32 2147483647, %v573
        %vm702 = vcmp.lt.f32.partialorder %v701, 0.0004427343
        %v703 = vsel %vm702, %v700, %v697
        %v704 = vadd.f32 %v575, 1.0
        %v705 = vlog2.pop %v704
        %v706 = vmul.f32 %v705, 0.6931472
        %v707 = vmul.f32 -0.5, %v575
        %v708 = vadd.f32 %v707, 1.0
        %v709 = vmul.f32 %v708, %v575
        %v710 = vand.u32 2147483647, %v575
        %vm711 = vcmp.lt.f32.partialorder %v710, 0.0004427343
        %v712 = vsel %vm711, %v709, %v706
        %v713 = vadd.f32 %v577, 1.0
        %v714 = vlog2.pop %v713
        %v715 = vmul.f32 %v714, 0.6931472
        %v716 = vmul.f32 -0.5, %v577
        %v717 = vadd.f32 %v716, 1.0
        %v718 = vmul.f32 %v717, %v577
        %v719 = vand.u32 2147483647, %v577
        %vm720 = vcmp.lt.f32.partialorder %v719, 0.0004427343
        %v721 = vsel %vm720, %v718, %v715
        %v722 = vmax.f32 %v436, 0.0
        %v723 = vmax.f32 %v441, 0.0
        %v724 = vmax.f32 %v446, 0.0
        %v725 = vmax.f32 %v451, 0.0
        %v726 = vmax.f32 %v456, 0.0
        %v727 = vmax.f32 %v461, 0.0
        %v728 = vmax.f32 %v466, 0.0
        %v729 = vmax.f32 %v471, 0.0
        %v730 = vmax.f32 %v476, 0.0
        %v731 = vmax.f32 %v481, 0.0
        %v732 = vmax.f32 %v486, 0.0
        %v733 = vmax.f32 %v491, 0.0
        %v734 = vmax.f32 %v496, 0.0
        %v735 = vmax.f32 %v501, 0.0
        %v736 = vmax.f32 %v506, 0.0
        %v737 = vmax.f32 %v511, 0.0
        %v738 = vadd.f32 %v586, %v722
        %v739 = vadd.f32 %v595, %v723
        %v740 = vadd.f32 %v604, %v724
        %v741 = vadd.f32 %v613, %v725
        %v742 = vadd.f32 %v622, %v726
        %v743 = vadd.f32 %v631, %v727
        %v744 = vadd.f32 %v640, %v728
        %v745 = vadd.f32 %v649, %v729
        %v746 = vadd.f32 %v658, %v730
        %v747 = vadd.f32 %v667, %v731
        %v748 = vadd.f32 %v676, %v732
        %v749 = vadd.f32 %v685, %v733
        %v750 = vadd.f32 %v694, %v734
        %v751 = vadd.f32 %v703, %v735
        %v752 = vadd.f32 %v712, %v736
        %v753 = vadd.f32 %v721, %v737
        %v754 = vld [vmem:[#allocation2] sm:$0xff]
        %v755 = vld [vmem:[#allocation2 + $0x8] sm:$0xff]
        %v756 = vld [vmem:[#allocation2 + $0x10] sm:$0xff]
        %v757 = vld [vmem:[#allocation2 + $0x18] sm:$0xff]
        %v758 = vld [vmem:[#allocation2 + $0x20] sm:$0xff]
        %v759 = vld [vmem:[#allocation2 + $0x28] sm:$0xff]
        %v760 = vld [vmem:[#allocation2 + $0x30] sm:$0xff]
        %v761 = vld [vmem:[#allocation2 + $0x38] sm:$0xff]
        %v762 = vld [vmem:[%s4] sm:$0x1]
        %v764 = vlaneseq
        %v765 = vshrl.u32 %v764, 7
        %v766 = vsub.s32 0, %v765
        %v767 = vrot.slane %v762, %v766
        %vm769 = vcmask 523264
        %v771 = vsel %vm769, %v738, 0
        %v774 = vsel %vm769, %v739, 0
        %v777 = vsel %vm769, %v740, 0
        %v780 = vsel %vm769, %v741, 0
        %v783 = vsel %vm769, %v742, 0
        %v786 = vsel %vm769, %v743, 0
        %v789 = vsel %vm769, %v744, 0
        %v792 = vsel %vm769, %v745, 0
        %v795 = vsel %vm769, %v746, 0
        %v798 = vsel %vm769, %v747, 0
        %v801 = vsel %vm769, %v748, 0
        %v804 = vsel %vm769, %v749, 0
        %v807 = vsel %vm769, %v750, 0
        %v810 = vsel %vm769, %v751, 0
        %v813 = vsel %vm769, %v752, 0
        %v816 = vsel %vm769, %v753, 0
        %818 = vmatprep.subr.mxu0 0.0
        %819 = vmatpush1.msra.mxu0 %v754
        %820 = vmatprep.subr.mxu0 0.0
        %821 = vmatpush1.msra.mxu0 %v755
        %822 = vmatprep.subr.mxu0 0.0
        %823 = vmatpush1.msra.mxu0 %v756
        %824 = vmatprep.subr.mxu0 0.0
        %825 = vmatpush1.msra.mxu0 %v757
        %826 = vmatprep.subr.mxu0 0.0
        %827 = vmatpush1.msra.mxu0 %v758
        %828 = vmatprep.subr.mxu0 0.0
        %829 = vmatpush1.msra.mxu0 %v759
        %830 = vmatprep.subr.mxu0 0.0
        %831 = vmatpush1.msra.mxu0 %v760
        %832 = vmatprep.subr.mxu0 0.0
        %833 = vmatpush1.msra.mxu0 %v761
        %834 = vmatprep.subr.mxu0 0.0
        %835 = vmatpush1.msra.mxu0 0.0
        %836 = vmatprep.subr.mxu0 0.0
        %837 = vmatpush1.msra.mxu0 0.0
        %838 = vmatprep.subr.mxu0 0.0
        %839 = vmatpush1.msra.mxu0 0.0
        %840 = vmatprep.subr.mxu0 0.0
        %841 = vmatpush1.msra.mxu0 0.0
        %842 = vmatprep.subr.mxu0 0.0
        %843 = vmatpush1.msra.mxu0 0.0
        %844 = vmatprep.subr.mxu0 0.0
        %845 = vmatpush1.msra.mxu0 0.0
        %846 = vmatprep.subr.mxu0 0.0
        %847 = vmatpush1.msra.mxu0 0.0
        %848 = vmatprep.subr.mxu0 0.0
        %849 = vmatpush1.msra.mxu0 0.0
        %850 = vmatprep.subr.mxu0 0.0
        %851 = vmatpush1.msra.mxu0 0.0
        %852 = vmatprep.subr.mxu0 0.0
        %853 = vmatpush1.msra.mxu0 0.0
        %854 = vmatprep.subr.mxu0 0.0
        %855 = vmatpush1.msra.mxu0 0.0
        %856 = vmatprep.subr.mxu0 0.0
        %857 = vmatpush1.msra.mxu0 0.0
        %858 = vmatprep.subr.mxu0 0.0
        %859 = vmatpush1.msra.mxu0 0.0
        %860 = vmatprep.subr.mxu0 0.0
        %861 = vmatpush1.msra.mxu0 0.0
        %862 = vmatprep.subr.mxu0 0.0
        %863 = vmatpush1.msra.mxu0 0.0
        %864 = vmatprep.subr.mxu0 0.0
        %865 = vmatpush1.msra.mxu0 0.0
        %866 = vmatprep.subr.mxu0 0.0
        %867 = vmatpush1.msra.mxu0 0.0
        %868 = vmatprep.subr.mxu0 0.0
        %869 = vmatpush1.msra.mxu0 0.0
        %870 = vmatprep.subr.mxu0 0.0
        %871 = vmatpush1.msra.mxu0 0.0
        %872 = vmatprep.subr.mxu0 0.0
        %873 = vmatpush1.msra.mxu0 0.0
        %874 = vmatprep.subr.mxu0 0.0
        %875 = vmatpush1.msra.mxu0 0.0
        %876 = vmatprep.subr.mxu0 0.0
        %877 = vmatpush1.msra.mxu0 0.0
        %878 = vmatprep.subr.mxu0 0.0
        %879 = vmatpush1.msra.mxu0 0.0
        %880 = vmatprep.subr.mxu0 0.0
        %881 = vmatpush1.msra.mxu0 0.0
        %882 = vmatprep.mubr.f32.mxu0 0.0
        %883 = vmatmul.mubr.f32.gmra.mrb[0].mxu0 %v771
        %v884 = vpop.f32.mrb[0].mxu0
        %v885 = vadd.f32 %v767, %v884
        %v886 = vpop.f32.mrb[0].mxu0
        %887 = vmatprep.mubr.f32.mxu0 0.0
        %888 = vmatmul.mubr.f32.gmra.mrb[0].mxu0 %v774
        %v889 = vpop.f32.mrb[0].mxu0
        %v890 = vadd.f32 %v767, %v889
        %v891 = vpop.f32.mrb[0].mxu0
        %892 = vmatprep.mubr.f32.mxu0 0.0
        %893 = vmatmul.mubr.f32.gmra.mrb[0].mxu0 %v777
        %v894 = vpop.f32.mrb[0].mxu0
        %v895 = vadd.f32 %v767, %v894
        %v896 = vpop.f32.mrb[0].mxu0
        %897 = vmatprep.mubr.f32.mxu0 0.0
        %898 = vmatmul.mubr.f32.gmra.mrb[0].mxu0 %v780
        %v899 = vpop.f32.mrb[0].mxu0
        %v900 = vadd.f32 %v767, %v899
        %v901 = vpop.f32.mrb[0].mxu0
        %902 = vmatprep.mubr.f32.mxu0 0.0
        %903 = vmatmul.mubr.f32.gmra.mrb[0].mxu0 %v783
        %v904 = vpop.f32.mrb[0].mxu0
        %v905 = vadd.f32 %v767, %v904
        %v906 = vpop.f32.mrb[0].mxu0
        %907 = vmatprep.mubr.f32.mxu0 0.0
        %908 = vmatmul.mubr.f32.gmra.mrb[0].mxu0 %v786
        %v909 = vpop.f32.mrb[0].mxu0
        %v910 = vadd.f32 %v767, %v909
        %v911 = vpop.f32.mrb[0].mxu0
        %912 = vmatprep.mubr.f32.mxu0 0.0
        %913 = vmatmul.mubr.f32.gmra.mrb[0].mxu0 %v789
        %v914 = vpop.f32.mrb[0].mxu0
        %v915 = vadd.f32 %v767, %v914
        %v916 = vpop.f32.mrb[0].mxu0
        %917 = vmatprep.mubr.f32.mxu0 0.0
        %918 = vmatmul.mubr.f32.gmra.mrb[0].mxu0 %v792
        %v919 = vpop.f32.mrb[0].mxu0
        %v920 = vadd.f32 %v767, %v919
        %v921 = vpop.f32.mrb[0].mxu0
        %922 = vmatprep.mubr.f32.mxu0 0.0
        %923 = vmatmul.mubr.f32.gmra.mrb[0].mxu0 %v795
        %v924 = vpop.f32.mrb[0].mxu0
        %v925 = vadd.f32 %v767, %v924
        %v926 = vpop.f32.mrb[0].mxu0
        %927 = vmatprep.mubr.f32.mxu0 0.0
        %928 = vmatmul.mubr.f32.gmra.mrb[0].mxu0 %v798
        %v929 = vpop.f32.mrb[0].mxu0
        %v930 = vadd.f32 %v767, %v929
        %v931 = vpop.f32.mrb[0].mxu0
        %932 = vmatprep.mubr.f32.mxu0 0.0
        %933 = vmatmul.mubr.f32.gmra.mrb[0].mxu0 %v801
        %v934 = vpop.f32.mrb[0].mxu0
        %v935 = vadd.f32 %v767, %v934
        %v936 = vpop.f32.mrb[0].mxu0
        %937 = vmatprep.mubr.f32.mxu0 0.0
        %938 = vmatmul.mubr.f32.gmra.mrb[0].mxu0 %v804
        %v939 = vpop.f32.mrb[0].mxu0
        %v940 = vadd.f32 %v767, %v939
        %v941 = vpop.f32.mrb[0].mxu0
        %942 = vmatprep.mubr.f32.mxu0 0.0
        %943 = vmatmul.mubr.f32.gmra.mrb[0].mxu0 %v807
        %v944 = vpop.f32.mrb[0].mxu0
        %v945 = vadd.f32 %v767, %v944
        %v946 = vpop.f32.mrb[0].mxu0
        %947 = vmatprep.mubr.f32.mxu0 0.0
        %948 = vmatmul.mubr.f32.gmra.mrb[0].mxu0 %v810
        %v949 = vpop.f32.mrb[0].mxu0
        %v950 = vadd.f32 %v767, %v949
        %v951 = vpop.f32.mrb[0].mxu0
        %952 = vmatprep.mubr.f32.mxu0 0.0
        %953 = vmatmul.mubr.f32.gmra.mrb[0].mxu0 %v813
        %v954 = vpop.f32.mrb[0].mxu0
        %v955 = vadd.f32 %v767, %v954
        %v956 = vpop.f32.mrb[0].mxu0
        %957 = vmatprep.mubr.f32.mxu0 0.0
        %958 = vmatmul.mubr.f32.gmra.mrb[0].mxu0 %v816
        %v959 = vpop.f32.mrb[0].mxu0
        %v960 = vadd.f32 %v767, %v959
        %v961 = vpop.f32.mrb[0].mxu0
        %962 = vdwg.mxu0
        %v963 = vand.u32 2147483647, %v885
        %v964 = vand.u32 2147483647, %v890
        %v965 = vand.u32 2147483647, %v895
        %v966 = vand.u32 2147483647, %v900
        %v967 = vand.u32 2147483647, %v905
        %v968 = vand.u32 2147483647, %v910
        %v969 = vand.u32 2147483647, %v915
        %v970 = vand.u32 2147483647, %v920
        %v971 = vand.u32 2147483647, %v925
        %v972 = vand.u32 2147483647, %v930
        %v973 = vand.u32 2147483647, %v935
        %v974 = vand.u32 2147483647, %v940
        %v975 = vand.u32 2147483647, %v945
        %v976 = vand.u32 2147483647, %v950
        %v977 = vand.u32 2147483647, %v955
        %v978 = vand.u32 2147483647, %v960
        %v979 = vsub.f32 0.0, %v963
        %v980 = vsub.f32 0.0, %v964
        %v981 = vsub.f32 0.0, %v965
        %v982 = vsub.f32 0.0, %v966
        %v983 = vsub.f32 0.0, %v967
        %v984 = vsub.f32 0.0, %v968
        %v985 = vsub.f32 0.0, %v969
        %v986 = vsub.f32 0.0, %v970
        %v987 = vsub.f32 0.0, %v971
        %v988 = vsub.f32 0.0, %v972
        %v989 = vsub.f32 0.0, %v973
        %v990 = vsub.f32 0.0, %v974
        %v991 = vsub.f32 0.0, %v975
        %v992 = vsub.f32 0.0, %v976
        %v993 = vsub.f32 0.0, %v977
        %v994 = vsub.f32 0.0, %v978
        %v995 = vmul.f32 %v979, 1.442695
        %v996 = vpow.pop %v995
        %v997 = vmul.f32 %v980, 1.442695
        %v998 = vpow.pop %v997
        %v999 = vmul.f32 %v981, 1.442695
        %v1000 = vpow.pop %v999
        %v1001 = vmul.f32 %v982, 1.442695
        %v1002 = vpow.pop %v1001
        %v1003 = vmul.f32 %v983, 1.442695
        %v1004 = vpow.pop %v1003
        %v1005 = vmul.f32 %v984, 1.442695
        %v1006 = vpow.pop %v1005
        %v1007 = vmul.f32 %v985, 1.442695
        %v1008 = vpow.pop %v1007
        %v1009 = vmul.f32 %v986, 1.442695
        %v1010 = vpow.pop %v1009
        %v1011 = vmul.f32 %v987, 1.442695
        %v1012 = vpow.pop %v1011
        %v1013 = vmul.f32 %v988, 1.442695
        %v1014 = vpow.pop %v1013
        %v1015 = vmul.f32 %v989, 1.442695
        %v1016 = vpow.pop %v1015
        %v1017 = vmul.f32 %v990, 1.442695
        %v1018 = vpow.pop %v1017
        %v1019 = vmul.f32 %v991, 1.442695
        %v1020 = vpow.pop %v1019
        %v1021 = vmul.f32 %v992, 1.442695
        %v1022 = vpow.pop %v1021
        %v1023 = vmul.f32 %v993, 1.442695
        %v1024 = vpow.pop %v1023
        %v1025 = vmul.f32 %v994, 1.442695
        %v1026 = vpow.pop %v1025
        %v1027 = vadd.f32 %v996, 1.0
        %v1028 = vlog2.pop %v1027
        %v1029 = vmul.f32 %v1028, 0.6931472
        %v1030 = vmul.f32 -0.5, %v996
        %v1031 = vadd.f32 %v1030, 1.0
        %v1032 = vmul.f32 %v1031, %v996
        %v1033 = vand.u32 2147483647, %v996
        %vm1034 = vcmp.lt.f32.partialorder %v1033, 0.0004427343
        %v1035 = vsel %vm1034, %v1032, %v1029
        %v1036 = vadd.f32 %v998, 1.0
        %v1037 = vlog2.pop %v1036
        %v1038 = vmul.f32 %v1037, 0.6931472
        %v1039 = vmul.f32 -0.5, %v998
        %v1040 = vadd.f32 %v1039, 1.0
        %v1041 = vmul.f32 %v1040, %v998
        %v1042 = vand.u32 2147483647, %v998
        %vm1043 = vcmp.lt.f32.partialorder %v1042, 0.0004427343
        %v1044 = vsel %vm1043, %v1041, %v1038
        %v1045 = vadd.f32 %v1000, 1.0
        %v1046 = vlog2.pop %v1045
        %v1047 = vmul.f32 %v1046, 0.6931472
        %v1048 = vmul.f32 -0.5, %v1000
        %v1049 = vadd.f32 %v1048, 1.0
        %v1050 = vmul.f32 %v1049, %v1000
        %v1051 = vand.u32 2147483647, %v1000
        %vm1052 = vcmp.lt.f32.partialorder %v1051, 0.0004427343
        %v1053 = vsel %vm1052, %v1050, %v1047
        %v1054 = vadd.f32 %v1002, 1.0
        %v1055 = vlog2.pop %v1054
        %v1056 = vmul.f32 %v1055, 0.6931472
        %v1057 = vmul.f32 -0.5, %v1002
        %v1058 = vadd.f32 %v1057, 1.0
        %v1059 = vmul.f32 %v1058, %v1002
        %v1060 = vand.u32 2147483647, %v1002
        %vm1061 = vcmp.lt.f32.partialorder %v1060, 0.0004427343
        %v1062 = vsel %vm1061, %v1059, %v1056
        %v1063 = vadd.f32 %v1004, 1.0
        %v1064 = vlog2.pop %v1063
        %v1065 = vmul.f32 %v1064, 0.6931472
        %v1066 = vmul.f32 -0.5, %v1004
        %v1067 = vadd.f32 %v1066, 1.0
        %v1068 = vmul.f32 %v1067, %v1004
        %v1069 = vand.u32 2147483647, %v1004
        %vm1070 = vcmp.lt.f32.partialorder %v1069, 0.0004427343
        %v1071 = vsel %vm1070, %v1068, %v1065
        %v1072 = vadd.f32 %v1006, 1.0
        %v1073 = vlog2.pop %v1072
        %v1074 = vmul.f32 %v1073, 0.6931472
        %v1075 = vmul.f32 -0.5, %v1006
        %v1076 = vadd.f32 %v1075, 1.0
        %v1077 = vmul.f32 %v1076, %v1006
        %v1078 = vand.u32 2147483647, %v1006
        %vm1079 = vcmp.lt.f32.partialorder %v1078, 0.0004427343
        %v1080 = vsel %vm1079, %v1077, %v1074
        %v1081 = vadd.f32 %v1008, 1.0
        %v1082 = vlog2.pop %v1081
        %v1083 = vmul.f32 %v1082, 0.6931472
        %v1084 = vmul.f32 -0.5, %v1008
        %v1085 = vadd.f32 %v1084, 1.0
        %v1086 = vmul.f32 %v1085, %v1008
        %v1087 = vand.u32 2147483647, %v1008
        %vm1088 = vcmp.lt.f32.partialorder %v1087, 0.0004427343
        %v1089 = vsel %vm1088, %v1086, %v1083
        %v1090 = vadd.f32 %v1010, 1.0
        %v1091 = vlog2.pop %v1090
        %v1092 = vmul.f32 %v1091, 0.6931472
        %v1093 = vmul.f32 -0.5, %v1010
        %v1094 = vadd.f32 %v1093, 1.0
        %v1095 = vmul.f32 %v1094, %v1010
        %v1096 = vand.u32 2147483647, %v1010
        %vm1097 = vcmp.lt.f32.partialorder %v1096, 0.0004427343
        %v1098 = vsel %vm1097, %v1095, %v1092
        %v1099 = vadd.f32 %v1012, 1.0
        %v1100 = vlog2.pop %v1099
        %v1101 = vmul.f32 %v1100, 0.6931472
        %v1102 = vmul.f32 -0.5, %v1012
        %v1103 = vadd.f32 %v1102, 1.0
        %v1104 = vmul.f32 %v1103, %v1012
        %v1105 = vand.u32 2147483647, %v1012
        %vm1106 = vcmp.lt.f32.partialorder %v1105, 0.0004427343
        %v1107 = vsel %vm1106, %v1104, %v1101
        %v1108 = vadd.f32 %v1014, 1.0
        %v1109 = vlog2.pop %v1108
        %v1110 = vmul.f32 %v1109, 0.6931472
        %v1111 = vmul.f32 -0.5, %v1014
        %v1112 = vadd.f32 %v1111, 1.0
        %v1113 = vmul.f32 %v1112, %v1014
        %v1114 = vand.u32 2147483647, %v1014
        %vm1115 = vcmp.lt.f32.partialorder %v1114, 0.0004427343
        %v1116 = vsel %vm1115, %v1113, %v1110
        %v1117 = vadd.f32 %v1016, 1.0
        %v1118 = vlog2.pop %v1117
        %v1119 = vmul.f32 %v1118, 0.6931472
        %v1120 = vmul.f32 -0.5, %v1016
        %v1121 = vadd.f32 %v1120, 1.0
        %v1122 = vmul.f32 %v1121, %v1016
        %v1123 = vand.u32 2147483647, %v1016
        %vm1124 = vcmp.lt.f32.partialorder %v1123, 0.0004427343
        %v1125 = vsel %vm1124, %v1122, %v1119
        %v1126 = vadd.f32 %v1018, 1.0
        %v1127 = vlog2.pop %v1126
        %v1128 = vmul.f32 %v1127, 0.6931472
        %v1129 = vmul.f32 -0.5, %v1018
        %v1130 = vadd.f32 %v1129, 1.0
        %v1131 = vmul.f32 %v1130, %v1018
        %v1132 = vand.u32 2147483647, %v1018
        %vm1133 = vcmp.lt.f32.partialorder %v1132, 0.0004427343
        %v1134 = vsel %vm1133, %v1131, %v1128
        %v1135 = vadd.f32 %v1020, 1.0
        %v1136 = vlog2.pop %v1135
        %v1137 = vmul.f32 %v1136, 0.6931472
        %v1138 = vmul.f32 -0.5, %v1020
        %v1139 = vadd.f32 %v1138, 1.0
        %v1140 = vmul.f32 %v1139, %v1020
        %v1141 = vand.u32 2147483647, %v1020
        %vm1142 = vcmp.lt.f32.partialorder %v1141, 0.0004427343
        %v1143 = vsel %vm1142, %v1140, %v1137
        %v1144 = vadd.f32 %v1022, 1.0
        %v1145 = vlog2.pop %v1144
        %v1146 = vmul.f32 %v1145, 0.6931472
        %v1147 = vmul.f32 -0.5, %v1022
        %v1148 = vadd.f32 %v1147, 1.0
        %v1149 = vmul.f32 %v1148, %v1022
        %v1150 = vand.u32 2147483647, %v1022
        %vm1151 = vcmp.lt.f32.partialorder %v1150, 0.0004427343
        %v1152 = vsel %vm1151, %v1149, %v1146
        %v1153 = vadd.f32 %v1024, 1.0
        %v1154 = vlog2.pop %v1153
        %v1155 = vmul.f32 %v1154, 0.6931472
        %v1156 = vmul.f32 -0.5, %v1024
        %v1157 = vadd.f32 %v1156, 1.0
        %v1158 = vmul.f32 %v1157, %v1024
        %v1159 = vand.u32 2147483647, %v1024
        %vm1160 = vcmp.lt.f32.partialorder %v1159, 0.0004427343
        %v1161 = vsel %vm1160, %v1158, %v1155
        %v1162 = vadd.f32 %v1026, 1.0
        %v1163 = vlog2.pop %v1162
        %v1164 = vmul.f32 %v1163, 0.6931472
        %v1165 = vmul.f32 -0.5, %v1026
        %v1166 = vadd.f32 %v1165, 1.0
        %v1167 = vmul.f32 %v1166, %v1026
        %v1168 = vand.u32 2147483647, %v1026
        %vm1169 = vcmp.lt.f32.partialorder %v1168, 0.0004427343
        %v1170 = vsel %vm1169, %v1167, %v1164
        %v1171 = vmax.f32 %v885, 0.0
        %v1172 = vmax.f32 %v890, 0.0
        %v1173 = vmax.f32 %v895, 0.0
        %v1174 = vmax.f32 %v900, 0.0
        %v1175 = vmax.f32 %v905, 0.0
        %v1176 = vmax.f32 %v910, 0.0
        %v1177 = vmax.f32 %v915, 0.0
        %v1178 = vmax.f32 %v920, 0.0
        %v1179 = vmax.f32 %v925, 0.0
        %v1180 = vmax.f32 %v930, 0.0
        %v1181 = vmax.f32 %v935, 0.0
        %v1182 = vmax.f32 %v940, 0.0
        %v1183 = vmax.f32 %v945, 0.0
        %v1184 = vmax.f32 %v950, 0.0
        %v1185 = vmax.f32 %v955, 0.0
        %v1186 = vmax.f32 %v960, 0.0
        %v1187 = vadd.f32 %v1035, %v1171
        %v1188 = vadd.f32 %v1044, %v1172
        %v1189 = vadd.f32 %v1053, %v1173
        %v1190 = vadd.f32 %v1062, %v1174
        %v1191 = vadd.f32 %v1071, %v1175
        %v1192 = vadd.f32 %v1080, %v1176
        %v1193 = vadd.f32 %v1089, %v1177
        %v1194 = vadd.f32 %v1098, %v1178
        %v1195 = vadd.f32 %v1107, %v1179
        %v1196 = vadd.f32 %v1116, %v1180
        %v1197 = vadd.f32 %v1125, %v1181
        %v1198 = vadd.f32 %v1134, %v1182
        %v1199 = vadd.f32 %v1143, %v1183
        %v1200 = vadd.f32 %v1152, %v1184
        %v1201 = vadd.f32 %v1161, %v1185
        %v1202 = vadd.f32 %v1170, %v1186
        %v1203 = vld [vmem:[%s5] sm:$0xff]
        %v1204 = vld [vmem:[%s5 + $0x8] sm:$0xff]
        %v1205 = vld [vmem:[%s5 + $0x10] sm:$0xff]
        %v1206 = vld [vmem:[%s5 + $0x18] sm:$0xff]
        %v1207 = vld [vmem:[%s5 + $0x20] sm:$0xff]
        %v1208 = vld [vmem:[%s5 + $0x28] sm:$0xff]
        %v1209 = vld [vmem:[%s5 + $0x30] sm:$0xff]
        %v1210 = vld [vmem:[%s5 + $0x38] sm:$0xff]
        %v1211 = vld [vmem:[%s5 + $0x40] sm:$0xff]
        %v1212 = vld [vmem:[%s5 + $0x48] sm:$0xff]
        %v1213 = vld [vmem:[%s5 + $0x50] sm:$0xff]
        %v1214 = vld [vmem:[%s5 + $0x58] sm:$0xff]
        %v1215 = vld [vmem:[%s5 + $0x60] sm:$0xff]
        %v1216 = vld [vmem:[%s5 + $0x68] sm:$0xff]
        %v1217 = vld [vmem:[%s5 + $0x70] sm:$0xff]
        %v1218 = vld [vmem:[%s5 + $0x78] sm:$0xff]
        %v1219 = vld [vmem:[%s5 + $0x80] sm:$0xff]
        %v1220 = vld [vmem:[%s5 + $0x88] sm:$0xff]
        %v1221 = vld [vmem:[%s5 + $0x90] sm:$0xff]
        %v1222 = vld [vmem:[%s5 + $0x98] sm:$0xff]
        %v1223 = vld [vmem:[%s5 + $0xa0] sm:$0xff]
        %v1224 = vld [vmem:[%s5 + $0xa8] sm:$0xff]
        %v1225 = vld [vmem:[%s5 + $0xb0] sm:$0xff]
        %v1226 = vld [vmem:[%s5 + $0xb8] sm:$0xff]
        %v1227 = vld [vmem:[%s5 + $0xc0] sm:$0xff]
        %v1228 = vld [vmem:[%s5 + $0xc8] sm:$0xff]
        %v1229 = vld [vmem:[%s5 + $0xd0] sm:$0xff]
        %v1230 = vld [vmem:[%s5 + $0xd8] sm:$0xff]
        %v1231 = vld [vmem:[%s5 + $0xe0] sm:$0xff]
        %v1232 = vld [vmem:[%s5 + $0xe8] sm:$0xff]
        %v1233 = vld [vmem:[%s5 + $0xf0] sm:$0xff]
        %v1234 = vld [vmem:[%s5 + $0xf8] sm:$0xff]
        %v1235 = vld [vmem:[%s6] sm:$0x3]
        %v1237 = vlaneseq
        %v1238 = vshrl.u32 %v1237, 7
        %v1239 = vsub.s32 0, %v1238
        %v1240 = vrot.slane %v1235, %v1239
        %v1241 = vlaneseq
        %v1242 = vshrl.u32 %v1241, 7
        %v1243 = vsub.s32 1, %v1242
        %v1244 = vrot.slane %v1235, %v1243
        %1247 = vmatprep.subr.mxu0 %v1204
        %1248 = vmatpush1.msra.mxu0 %v1203
        %1249 = vmatprep.subr.mxu0 %v1206
        %1250 = vmatpush1.msra.mxu0 %v1205
        %1251 = vmatprep.subr.mxu0 %v1208
        %1252 = vmatpush1.msra.mxu0 %v1207
        %1253 = vmatprep.subr.mxu0 %v1210
        %1254 = vmatpush1.msra.mxu0 %v1209
        %1255 = vmatprep.subr.mxu0 %v1212
        %1256 = vmatpush1.msra.mxu0 %v1211
        %1257 = vmatprep.subr.mxu0 %v1214
        %1258 = vmatpush1.msra.mxu0 %v1213
        %1259 = vmatprep.subr.mxu0 %v1216
        %1260 = vmatpush1.msra.mxu0 %v1215
        %1261 = vmatprep.subr.mxu0 %v1218
        %1262 = vmatpush1.msra.mxu0 %v1217
        %1263 = vmatprep.subr.mxu0 %v1220
        %1264 = vmatpush1.msra.mxu0 %v1219
        %1265 = vmatprep.subr.mxu0 %v1222
        %1266 = vmatpush1.msra.mxu0 %v1221
        %1267 = vmatprep.subr.mxu0 %v1224
        %1268 = vmatpush1.msra.mxu0 %v1223
        %1269 = vmatprep.subr.mxu0 %v1226
        %1270 = vmatpush1.msra.mxu0 %v1225
        %1271 = vmatprep.subr.mxu0 %v1228
        %1272 = vmatpush1.msra.mxu0 %v1227
        %1273 = vmatprep.subr.mxu0 %v1230
        %1274 = vmatpush1.msra.mxu0 %v1229
        %1275 = vmatprep.subr.mxu0 %v1232
        %1276 = vmatpush1.msra.mxu0 %v1231
        %1277 = vmatprep.subr.mxu0 %v1234
        %1278 = vmatpush1.msra.mxu0 %v1233
        %1279 = vmatprep.subr.mxu0 0.0
        %1280 = vmatpush1.msra.mxu0 0.0
        %1281 = vmatprep.subr.mxu0 0.0
        %1282 = vmatpush1.msra.mxu0 0.0
        %1283 = vmatprep.subr.mxu0 0.0
        %1284 = vmatpush1.msra.mxu0 0.0
        %1285 = vmatprep.subr.mxu0 0.0
        %1286 = vmatpush1.msra.mxu0 0.0
        %1287 = vmatprep.subr.mxu0 0.0
        %1288 = vmatpush1.msra.mxu0 0.0
        %1289 = vmatprep.subr.mxu0 0.0
        %1290 = vmatpush1.msra.mxu0 0.0
        %1291 = vmatprep.subr.mxu0 0.0
        %1292 = vmatpush1.msra.mxu0 0.0
        %1293 = vmatprep.subr.mxu0 0.0
        %1294 = vmatpush1.msra.mxu0 0.0
        %1295 = vmatprep.subr.mxu0 0.0
        %1296 = vmatpush1.msra.mxu0 0.0
        %1297 = vmatprep.subr.mxu0 0.0
        %1298 = vmatpush1.msra.mxu0 0.0
        %1299 = vmatprep.subr.mxu0 0.0
        %1300 = vmatpush1.msra.mxu0 0.0
        %1301 = vmatprep.subr.mxu0 0.0
        %1302 = vmatpush1.msra.mxu0 0.0
        %1303 = vmatprep.subr.mxu0 0.0
        %1304 = vmatpush1.msra.mxu0 0.0
        %1305 = vmatprep.subr.mxu0 0.0
        %1306 = vmatpush1.msra.mxu0 0.0
        %1307 = vmatprep.subr.mxu0 0.0
        %1308 = vmatpush1.msra.mxu0 0.0
        %1309 = vmatprep.subr.mxu0 0.0
        %1310 = vmatpush1.msra.mxu0 0.0
        %1311 = vmatprep.mubr.f32.mxu0 0.0
        %1312 = vmatmul.mubr.f32.gmra.mrb[0].mxu0 %v1187
        %v1313 = vpop.f32.mrb[0].mxu0
        %v1314 = vadd.f32 %v1240, %v1313
        %v1315 = vpop.f32.mrb[0].mxu0
        %v1316 = vadd.f32 %v1244, %v1315
        %1317 = vmatprep.mubr.f32.mxu0 0.0
        %1318 = vmatmul.mubr.f32.gmra.mrb[0].mxu0 %v1188
        %v1319 = vpop.f32.mrb[0].mxu0
        %v1320 = vadd.f32 %v1240, %v1319
        %v1321 = vpop.f32.mrb[0].mxu0
        %v1322 = vadd.f32 %v1244, %v1321
        %1323 = vmatprep.mubr.f32.mxu0 0.0
        %1324 = vmatmul.mubr.f32.gmra.mrb[0].mxu0 %v1189
        %v1325 = vpop.f32.mrb[0].mxu0
        %v1326 = vadd.f32 %v1240, %v1325
        %v1327 = vpop.f32.mrb[0].mxu0
        %v1328 = vadd.f32 %v1244, %v1327
        %1329 = vmatprep.mubr.f32.mxu0 0.0
        %1330 = vmatmul.mubr.f32.gmra.mrb[0].mxu0 %v1190
        %v1331 = vpop.f32.mrb[0].mxu0
        %v1332 = vadd.f32 %v1240, %v1331
        %v1333 = vpop.f32.mrb[0].mxu0
        %v1334 = vadd.f32 %v1244, %v1333
        %1335 = vmatprep.mubr.f32.mxu0 0.0
        %1336 = vmatmul.mubr.f32.gmra.mrb[0].mxu0 %v1191
        %v1337 = vpop.f32.mrb[0].mxu0
        %v1338 = vadd.f32 %v1240, %v1337
        %v1339 = vpop.f32.mrb[0].mxu0
        %v1340 = vadd.f32 %v1244, %v1339
        %1341 = vmatprep.mubr.f32.mxu0 0.0
        %1342 = vmatmul.mubr.f32.gmra.mrb[0].mxu0 %v1192
        %v1343 = vpop.f32.mrb[0].mxu0
        %v1344 = vadd.f32 %v1240, %v1343
        %v1345 = vpop.f32.mrb[0].mxu0
        %v1346 = vadd.f32 %v1244, %v1345
        %1347 = vmatprep.mubr.f32.mxu0 0.0
        %1348 = vmatmul.mubr.f32.gmra.mrb[0].mxu0 %v1193
        %v1349 = vpop.f32.mrb[0].mxu0
        %v1350 = vadd.f32 %v1240, %v1349
        %v1351 = vpop.f32.mrb[0].mxu0
        %v1352 = vadd.f32 %v1244, %v1351
        %1353 = vmatprep.mubr.f32.mxu0 0.0
        %1354 = vmatmul.mubr.f32.gmra.mrb[0].mxu0 %v1194
        %v1355 = vpop.f32.mrb[0].mxu0
        %v1356 = vadd.f32 %v1240, %v1355
        %v1357 = vpop.f32.mrb[0].mxu0
        %v1358 = vadd.f32 %v1244, %v1357
        %1359 = vmatprep.mubr.f32.mxu0 0.0
        %1360 = vmatmul.mubr.f32.gmra.mrb[0].mxu0 %v1195
        %v1361 = vpop.f32.mrb[0].mxu0
        %v1362 = vadd.f32 %v1240, %v1361
        %v1363 = vpop.f32.mrb[0].mxu0
        %v1364 = vadd.f32 %v1244, %v1363
        %1365 = vmatprep.mubr.f32.mxu0 0.0
        %1366 = vmatmul.mubr.f32.gmra.mrb[0].mxu0 %v1196
        %v1367 = vpop.f32.mrb[0].mxu0
        %v1368 = vadd.f32 %v1240, %v1367
        %v1369 = vpop.f32.mrb[0].mxu0
        %v1370 = vadd.f32 %v1244, %v1369
        %1371 = vmatprep.mubr.f32.mxu0 0.0
        %1372 = vmatmul.mubr.f32.gmra.mrb[0].mxu0 %v1197
        %v1373 = vpop.f32.mrb[0].mxu0
        %v1374 = vadd.f32 %v1240, %v1373
        %v1375 = vpop.f32.mrb[0].mxu0
        %v1376 = vadd.f32 %v1244, %v1375
        %1377 = vmatprep.mubr.f32.mxu0 0.0
        %1378 = vmatmul.mubr.f32.gmra.mrb[0].mxu0 %v1198
        %v1379 = vpop.f32.mrb[0].mxu0
        %v1380 = vadd.f32 %v1240, %v1379
        %v1381 = vpop.f32.mrb[0].mxu0
        %v1382 = vadd.f32 %v1244, %v1381
        %1383 = vmatprep.mubr.f32.mxu0 0.0
        %1384 = vmatmul.mubr.f32.gmra.mrb[0].mxu0 %v1199
        %v1385 = vpop.f32.mrb[0].mxu0
        %v1386 = vadd.f32 %v1240, %v1385
        %v1387 = vpop.f32.mrb[0].mxu0
        %v1388 = vadd.f32 %v1244, %v1387
        %1389 = vmatprep.mubr.f32.mxu0 0.0
        %1390 = vmatmul.mubr.f32.gmra.mrb[0].mxu0 %v1200
        %v1391 = vpop.f32.mrb[0].mxu0
        %v1392 = vadd.f32 %v1240, %v1391
        %v1393 = vpop.f32.mrb[0].mxu0
        %v1394 = vadd.f32 %v1244, %v1393
        %1395 = vmatprep.mubr.f32.mxu0 0.0
        %1396 = vmatmul.mubr.f32.gmra.mrb[0].mxu0 %v1201
        %v1397 = vpop.f32.mrb[0].mxu0
        %v1398 = vadd.f32 %v1240, %v1397
        %v1399 = vpop.f32.mrb[0].mxu0
        %v1400 = vadd.f32 %v1244, %v1399
        %1401 = vmatprep.mubr.f32.mxu0 0.0
        %1402 = vmatmul.mubr.f32.gmra.mrb[0].mxu0 %v1202
        %v1403 = vpop.f32.mrb[0].mxu0
        %v1404 = vadd.f32 %v1240, %v1403
        %v1405 = vpop.f32.mrb[0].mxu0
        %v1406 = vadd.f32 %v1244, %v1405
        %1407 = vdwg.mxu0
        %v1408 = vmax.f32 %v1314, %v1316
        %1409 = vmax.xlane.f32.xlu0 %v1408
        %v1410 = vpop.xlane.xlu0 %1409
        %v1411 = vmax.f32 %v1320, %v1322
        %1412 = vmax.xlane.f32.xlu0 %v1411
        %v1413 = vpop.xlane.xlu0 %1412
        %v1414 = vmax.f32 %v1326, %v1328
        %1415 = vmax.xlane.f32.xlu0 %v1414
        %v1416 = vpop.xlane.xlu0 %1415
        %v1417 = vmax.f32 %v1332, %v1334
        %1418 = vmax.xlane.f32.xlu0 %v1417
        %v1419 = vpop.xlane.xlu0 %1418
        %v1420 = vmax.f32 %v1338, %v1340
        %1421 = vmax.xlane.f32.xlu0 %v1420
        %v1422 = vpop.xlane.xlu0 %1421
        %v1423 = vmax.f32 %v1344, %v1346
        %1424 = vmax.xlane.f32.xlu0 %v1423
        %v1425 = vpop.xlane.xlu0 %1424
        %v1426 = vmax.f32 %v1350, %v1352
        %1427 = vmax.xlane.f32.xlu0 %v1426
        %v1428 = vpop.xlane.xlu0 %1427
        %v1429 = vmax.f32 %v1356, %v1358
        %1430 = vmax.xlane.f32.xlu0 %v1429
        %v1431 = vpop.xlane.xlu0 %1430
        %v1432 = vmax.f32 %v1362, %v1364
        %1433 = vmax.xlane.f32.xlu0 %v1432
        %v1434 = vpop.xlane.xlu0 %1433
        %v1435 = vmax.f32 %v1368, %v1370
        %1436 = vmax.xlane.f32.xlu0 %v1435
        %v1437 = vpop.xlane.xlu0 %1436
        %v1438 = vmax.f32 %v1374, %v1376
        %1439 = vmax.xlane.f32.xlu0 %v1438
        %v1440 = vpop.xlane.xlu0 %1439
        %v1441 = vmax.f32 %v1380, %v1382
        %1442 = vmax.xlane.f32.xlu0 %v1441
        %v1443 = vpop.xlane.xlu0 %1442
        %v1444 = vmax.f32 %v1386, %v1388
        %1445 = vmax.xlane.f32.xlu0 %v1444
        %v1446 = vpop.xlane.xlu0 %1445
        %v1447 = vmax.f32 %v1392, %v1394
        %1448 = vmax.xlane.f32.xlu0 %v1447
        %v1449 = vpop.xlane.xlu0 %1448
        %v1450 = vmax.f32 %v1398, %v1400
        %1451 = vmax.xlane.f32.xlu0 %v1450
        %v1452 = vpop.xlane.xlu0 %1451
        %v1453 = vmax.f32 %v1404, %v1406
        %1454 = vmax.xlane.f32.xlu0 %v1453
        %v1455 = vpop.xlane.xlu0 %1454
        %v1456 = vsub.f32 %v1314, %v1410
        %v1457 = vsub.f32 %v1316, %v1410
        %v1458 = vsub.f32 %v1320, %v1413
        %v1459 = vsub.f32 %v1322, %v1413
        %v1460 = vsub.f32 %v1326, %v1416
        %v1461 = vsub.f32 %v1328, %v1416
        %v1462 = vsub.f32 %v1332, %v1419
        %v1463 = vsub.f32 %v1334, %v1419
        %v1464 = vsub.f32 %v1338, %v1422
        %v1465 = vsub.f32 %v1340, %v1422
        %v1466 = vsub.f32 %v1344, %v1425
        %v1467 = vsub.f32 %v1346, %v1425
        %v1468 = vsub.f32 %v1350, %v1428
        %v1469 = vsub.f32 %v1352, %v1428
        %v1470 = vsub.f32 %v1356, %v1431
        %v1471 = vsub.f32 %v1358, %v1431
        %v1472 = vsub.f32 %v1362, %v1434
        %v1473 = vsub.f32 %v1364, %v1434
        %v1474 = vsub.f32 %v1368, %v1437
        %v1475 = vsub.f32 %v1370, %v1437
        %v1476 = vsub.f32 %v1374, %v1440
        %v1477 = vsub.f32 %v1376, %v1440
        %v1478 = vsub.f32 %v1380, %v1443
        %v1479 = vsub.f32 %v1382, %v1443
        %v1480 = vsub.f32 %v1386, %v1446
        %v1481 = vsub.f32 %v1388, %v1446
        %v1482 = vsub.f32 %v1392, %v1449
        %v1483 = vsub.f32 %v1394, %v1449
        %v1484 = vsub.f32 %v1398, %v1452
        %v1485 = vsub.f32 %v1400, %v1452
        %v1486 = vsub.f32 %v1404, %v1455
        %v1487 = vsub.f32 %v1406, %v1455
        %v1488 = vmul.f32 %v1456, 1.442695
        %v1489 = vpow.pop %v1488
        %v1490 = vmul.f32 %v1457, 1.442695
        %v1491 = vpow.pop %v1490
        %v1492 = vmul.f32 %v1458, 1.442695
        %v1493 = vpow.pop %v1492
        %v1494 = vmul.f32 %v1459, 1.442695
        %v1495 = vpow.pop %v1494
        %v1496 = vmul.f32 %v1460, 1.442695
        %v1497 = vpow.pop %v1496
        %v1498 = vmul.f32 %v1461, 1.442695
        %v1499 = vpow.pop %v1498
        %v1500 = vmul.f32 %v1462, 1.442695
        %v1501 = vpow.pop %v1500
        %v1502 = vmul.f32 %v1463, 1.442695
        %v1503 = vpow.pop %v1502
        %v1504 = vmul.f32 %v1464, 1.442695
        %v1505 = vpow.pop %v1504
        %v1506 = vmul.f32 %v1465, 1.442695
        %v1507 = vpow.pop %v1506
        %v1508 = vmul.f32 %v1466, 1.442695
        %v1509 = vpow.pop %v1508
        %v1510 = vmul.f32 %v1467, 1.442695
        %v1511 = vpow.pop %v1510
        %v1512 = vmul.f32 %v1468, 1.442695
        %v1513 = vpow.pop %v1512
        %v1514 = vmul.f32 %v1469, 1.442695
        %v1515 = vpow.pop %v1514
        %v1516 = vmul.f32 %v1470, 1.442695
        %v1517 = vpow.pop %v1516
        %v1518 = vmul.f32 %v1471, 1.442695
        %v1519 = vpow.pop %v1518
        %v1520 = vmul.f32 %v1472, 1.442695
        %v1521 = vpow.pop %v1520
        %v1522 = vmul.f32 %v1473, 1.442695
        %v1523 = vpow.pop %v1522
        %v1524 = vmul.f32 %v1474, 1.442695
        %v1525 = vpow.pop %v1524
        %v1526 = vmul.f32 %v1475, 1.442695
        %v1527 = vpow.pop %v1526
        %v1528 = vmul.f32 %v1476, 1.442695
        %v1529 = vpow.pop %v1528
        %v1530 = vmul.f32 %v1477, 1.442695
        %v1531 = vpow.pop %v1530
        %v1532 = vmul.f32 %v1478, 1.442695
        %v1533 = vpow.pop %v1532
        %v1534 = vmul.f32 %v1479, 1.442695
        %v1535 = vpow.pop %v1534
        %v1536 = vmul.f32 %v1480, 1.442695
        %v1537 = vpow.pop %v1536
        %v1538 = vmul.f32 %v1481, 1.442695
        %v1539 = vpow.pop %v1538
        %v1540 = vmul.f32 %v1482, 1.442695
        %v1541 = vpow.pop %v1540
        %v1542 = vmul.f32 %v1483, 1.442695
        %v1543 = vpow.pop %v1542
        %v1544 = vmul.f32 %v1484, 1.442695
        %v1545 = vpow.pop %v1544
        %v1546 = vmul.f32 %v1485, 1.442695
        %v1547 = vpow.pop %v1546
        %v1548 = vmul.f32 %v1486, 1.442695
        %v1549 = vpow.pop %v1548
        %v1550 = vmul.f32 %v1487, 1.442695
        %v1551 = vpow.pop %v1550
        %v1552 = vadd.f32 %v1489, %v1491
        %1553 = vadd.xlane.f32.xlu0 %v1552
        %v1554 = vpop.xlane.xlu0 %1553
        %v1555 = vadd.f32 %v1493, %v1495
        %1556 = vadd.xlane.f32.xlu0 %v1555
        %v1557 = vpop.xlane.xlu0 %1556
        %v1558 = vadd.f32 %v1497, %v1499
        %1559 = vadd.xlane.f32.xlu0 %v1558
        %v1560 = vpop.xlane.xlu0 %1559
        %v1561 = vadd.f32 %v1501, %v1503
        %1562 = vadd.xlane.f32.xlu0 %v1561
        %v1563 = vpop.xlane.xlu0 %1562
        %v1564 = vadd.f32 %v1505, %v1507
        %1565 = vadd.xlane.f32.xlu0 %v1564
        %v1566 = vpop.xlane.xlu0 %1565
        %v1567 = vadd.f32 %v1509, %v1511
        %1568 = vadd.xlane.f32.xlu0 %v1567
        %v1569 = vpop.xlane.xlu0 %1568
        %v1570 = vadd.f32 %v1513, %v1515
        %1571 = vadd.xlane.f32.xlu0 %v1570
        %v1572 = vpop.xlane.xlu0 %1571
        %v1573 = vadd.f32 %v1517, %v1519
        %1574 = vadd.xlane.f32.xlu0 %v1573
        %v1575 = vpop.xlane.xlu0 %1574
        %v1576 = vadd.f32 %v1521, %v1523
        %1577 = vadd.xlane.f32.xlu0 %v1576
        %v1578 = vpop.xlane.xlu0 %1577
        %v1579 = vadd.f32 %v1525, %v1527
        %1580 = vadd.xlane.f32.xlu0 %v1579
        %v1581 = vpop.xlane.xlu0 %1580
        %v1582 = vadd.f32 %v1529, %v1531
        %1583 = vadd.xlane.f32.xlu0 %v1582
        %v1584 = vpop.xlane.xlu0 %1583
        %v1585 = vadd.f32 %v1533, %v1535
        %1586 = vadd.xlane.f32.xlu0 %v1585
        %v1587 = vpop.xlane.xlu0 %1586
        %v1588 = vadd.f32 %v1537, %v1539
        %1589 = vadd.xlane.f32.xlu0 %v1588
        %v1590 = vpop.xlane.xlu0 %1589
        %v1591 = vadd.f32 %v1541, %v1543
        %1592 = vadd.xlane.f32.xlu0 %v1591
        %v1593 = vpop.xlane.xlu0 %1592
        %v1594 = vadd.f32 %v1545, %v1547
        %1595 = vadd.xlane.f32.xlu0 %v1594
        %v1596 = vpop.xlane.xlu0 %1595
        %v1597 = vadd.f32 %v1549, %v1551
        %1598 = vadd.xlane.f32.xlu0 %v1597
        %v1599 = vpop.xlane.xlu0 %1598
        %v1600 = vrcp.pop %v1554
        %v1601 = vrcp.pop %v1557
        %v1602 = vrcp.pop %v1560
        %v1603 = vrcp.pop %v1563
        %v1604 = vrcp.pop %v1566
        %v1605 = vrcp.pop %v1569
        %v1606 = vrcp.pop %v1572
        %v1607 = vrcp.pop %v1575
        %v1608 = vrcp.pop %v1578
        %v1609 = vrcp.pop %v1581
        %v1610 = vrcp.pop %v1584
        %v1611 = vrcp.pop %v1587
        %v1612 = vrcp.pop %v1590
        %v1613 = vrcp.pop %v1593
        %v1614 = vrcp.pop %v1596
        %v1615 = vrcp.pop %v1599
        %v1616 = vmul.f32 %v1489, %v1600
        %v1617 = vmul.f32 %v1491, %v1600
        %v1618 = vmul.f32 %v1493, %v1601
        %v1619 = vmul.f32 %v1495, %v1601
        %v1620 = vmul.f32 %v1497, %v1602
        %v1621 = vmul.f32 %v1499, %v1602
        %v1622 = vmul.f32 %v1501, %v1603
        %v1623 = vmul.f32 %v1503, %v1603
        %v1624 = vmul.f32 %v1505, %v1604
        %v1625 = vmul.f32 %v1507, %v1604
        %v1626 = vmul.f32 %v1509, %v1605
        %v1627 = vmul.f32 %v1511, %v1605
        %v1628 = vmul.f32 %v1513, %v1606
        %v1629 = vmul.f32 %v1515, %v1606
        %v1630 = vmul.f32 %v1517, %v1607
        %v1631 = vmul.f32 %v1519, %v1607
        %v1632 = vmul.f32 %v1521, %v1608
        %v1633 = vmul.f32 %v1523, %v1608
        %v1634 = vmul.f32 %v1525, %v1609
        %v1635 = vmul.f32 %v1527, %v1609
        %v1636 = vmul.f32 %v1529, %v1610
        %v1637 = vmul.f32 %v1531, %v1610
        %v1638 = vmul.f32 %v1533, %v1611
        %v1639 = vmul.f32 %v1535, %v1611
        %v1640 = vmul.f32 %v1537, %v1612
        %v1641 = vmul.f32 %v1539, %v1612
        %v1642 = vmul.f32 %v1541, %v1613
        %v1643 = vmul.f32 %v1543, %v1613
        %v1644 = vmul.f32 %v1545, %v1614
        %v1645 = vmul.f32 %v1547, %v1614
        %v1646 = vmul.f32 %v1549, %v1615
        %v1647 = vmul.f32 %v1551, %v1615
        %1648 = vst [vmem:[%s287] sm:$0xff] %v1616
        %1649 = vst [vmem:[%s287 + $0x8] sm:$0xff] %v1617
        %1650 = vst [vmem:[%s287 + $0x10] sm:$0xff] %v1618
        %1651 = vst [vmem:[%s287 + $0x18] sm:$0xff] %v1619
        %1652 = vst [vmem:[%s287 + $0x20] sm:$0xff] %v1620
        %1653 = vst [vmem:[%s287 + $0x28] sm:$0xff] %v1621
        %1654 = vst [vmem:[%s287 + $0x30] sm:$0xff] %v1622
        %1655 = vst [vmem:[%s287 + $0x38] sm:$0xff] %v1623
        %1656 = vst [vmem:[%s287 + $0x40] sm:$0xff] %v1624
        %1657 = vst [vmem:[%s287 + $0x48] sm:$0xff] %v1625
        %1658 = vst [vmem:[%s287 + $0x50] sm:$0xff] %v1626
        %1659 = vst [vmem:[%s287 + $0x58] sm:$0xff] %v1627
        %1660 = vst [vmem:[%s287 + $0x60] sm:$0xff] %v1628
        %1661 = vst [vmem:[%s287 + $0x68] sm:$0xff] %v1629
        %1662 = vst [vmem:[%s287 + $0x70] sm:$0xff] %v1630
        %1663 = vst [vmem:[%s287 + $0x78] sm:$0xff] %v1631
        %1664 = vst [vmem:[%s287 + $0x80] sm:$0xff] %v1632
        %1665 = vst [vmem:[%s287 + $0x88] sm:$0xff] %v1633
        %1666 = vst [vmem:[%s287 + $0x90] sm:$0xff] %v1634
        %1667 = vst [vmem:[%s287 + $0x98] sm:$0xff] %v1635
        %1668 = vst [vmem:[%s287 + $0xa0] sm:$0xff] %v1636
        %1669 = vst [vmem:[%s287 + $0xa8] sm:$0xff] %v1637
        %1670 = vst [vmem:[%s287 + $0xb0] sm:$0xff] %v1638
        %1671 = vst [vmem:[%s287 + $0xb8] sm:$0xff] %v1639
        %1672 = vst [vmem:[%s287 + $0xc0] sm:$0xff] %v1640
        %1673 = vst [vmem:[%s287 + $0xc8] sm:$0xff] %v1641
        %1674 = vst [vmem:[%s287 + $0xd0] sm:$0xff] %v1642
        %1675 = vst [vmem:[%s287 + $0xd8] sm:$0xff] %v1643
        %1676 = vst [vmem:[%s287 + $0xe0] sm:$0xff] %v1644
        %1677 = vst [vmem:[%s287 + $0xe8] sm:$0xff] %v1645
        %1678 = vst [vmem:[%s287 + $0xf0] sm:$0xff] %v1646
        %1679 = vst [vmem:[%s287 + $0xf8] sm:$0xff] %v1647
        %s1680 = sand.u32 %s182, 1
        %s1681 = scalar_lea.sflag [#allocation4], %s1680
        %s1682 = sand.u32 %s182, 1
        %s1683 = smul.addr %s1682, 256
        %s1684 = scalar_lea.vmem [#allocation5], %s1683
        // Predicated region
        $region53: #{tpu_custom_call.1} parent=47 // pred_check
          %p1685 = pneg %p192
        $region54: #{tpu_custom_call.1} parent=47 // pred_check_branch
          %1687 = sbr.rel (%p1685) target = $region56
        $region55: #{tpu_custom_call.1} parent=47 // pred_region
          %s1688 = smul.u32 16, %s22
          %s1690 = ssub.s32 4096, 4096
          %1691 = vsyncadd %s1681, %s1690
          %s1692 = smul.addr %s1688, 2
          %s1693 = smul.addr %s1692, 128
          %s1694 = scalar_lea.hbm %s7, %s1693
          %s1695 = sshll.u32 %s1684, 4
          %s1696 = int_to_ptr.vmem [resolvable:$true] %s1695
          %1701 = dma.vmem_to_hbm [thread:$0]  %s1696, 4096, %s1694, %s1681, 256, 256, 16
        $region56: #{tpu_custom_call.1} parent=47 // pred_fallthru
          _
      $region48: #{tpu_custom_call.1} parent=5 // pred_fallthru
        _
      %p1702 = scmp.le.s32.totalorder 2, %s17
      // Predicated region
      $region57: #{tpu_custom_call.1} parent=5 // pred_check
        %p1703 = pneg %p1702
      $region58: #{tpu_custom_call.1} parent=5 // pred_check_branch
        %1705 = sbr.rel (%p1703) target = $region60
      $region59: #{tpu_custom_call.1} parent=5 // pred_region
        %s1706 = ssub.s32 %s17, 2
        // Predicated region
        $region61: #{tpu_custom_call.1} parent=59 // pred_check
          %p1707 = pneg %p198
        $region62: #{tpu_custom_call.1} parent=59 // pred_check_branch
          %1709 = sbr.rel (%p1707) target = $region64
        $region63: #{tpu_custom_call.1} parent=59 // pred_region
          %s1710 = sand.u32 %s183, 1
          %s1711 = scalar_lea.sflag [#allocation4], %s1710
          %s1712 = sand.u32 %s183, 1
          %s1713 = smul.addr %s1712, 256
          %s1714 = scalar_lea.vmem [#allocation5], %s1713
          %1715 = dma.done %s1711, 4096
        $region64: #{tpu_custom_call.1} parent=59 // pred_fallthru
          _
      $region60: #{tpu_custom_call.1} parent=5 // pred_fallthru
        _
    $region6: #{tpu_custom_call.1} parent=1 // loop_footer
      %s21 = sadd.s32 1, %s17
    $region7: #{tpu_custom_call.1} parent=1 // loop_footer_branch
      %16 = sbr.rel target = $region3
    $region8: #{tpu_custom_call.1} parent=1 // loop_exit
      _
    %1716 = vsyncpa [#allocation3], 1
    %s1717 = scalar_lea.sflag [#allocation3], 1
    %1718 = vsyncpa %s1717, 1
    %1719 = vsyncpa [#allocation4], 1
    %s1720 = scalar_lea.sflag [#allocation4], 1
    %1721 = vsyncpa %s1720, 1

</llo_original>
